<compile_context>
chip_gen: v5e
topology: v5e:2x2
jax: 0.10.0
libtpu: 0.0.40
codegen_flags: <defaults>
</compile_context>

<pallas_src>
import functools

import jax
import jax.numpy as jnp
from jax.experimental import pallas as pl
from jax.experimental.pallas import tpu as pltpu


def _round_up(x, m):
    return (x + m - 1) // m * m


def _layernorm_masked(x, gamma, beta, n_valid, eps=1e-5):
    """LayerNorm over the first `n_valid` lanes; padded lanes (zeros in, zeros out)."""
    lane = jax.lax.broadcasted_iota(jnp.int32, x.shape, 1)
    valid = lane < n_valid
    inv_n = 1.0 / n_valid
    mean = jnp.sum(x, axis=-1, keepdims=True) * inv_n      # padded lanes are zero
    centered = jnp.where(valid, x - mean, 0.0)
    var = jnp.sum(centered * centered, axis=-1, keepdims=True) * inv_n
    return centered * jax.lax.rsqrt(var + eps) * gamma + beta


def blocks_kernel(n_heads, c_real,
                  x_ref, ln1w_ref, ln1b_ref, wqkv_ref, wo_ref, bo_ref,
                  ln2w_ref, ln2b_ref, w1_ref, b1_ref, w2_ref, b2_ref,
                  lnfw_ref, lnfb_ref, o_ref, sa_ref):
    """One sequence x all transformer blocks; grid = (batch, layer), activation
    resident in o_ref across the layer axis.  Final LayerNorm applied at the
    last layer so the lm_head kernel is a pure matmul."""
    layer = pl.program_id(1)
    n_layers = pl.num_programs(1)

    @pl.when(layer == 0)
    def _():                               # load the embedded input once per sequence
        o_ref[...] = x_ref[...]

    x = o_ref[...]                         # (T, Cp) f32, resident across layers
    T = x.shape[0]
    qkv_n = wqkv_ref.shape[2]
    hs_p = qkv_n // (3 * n_heads)          # per-head slot, padded to 128 lanes
    htot = n_heads * hs_p

    # causal additive mask generated in-kernel (no HBM traffic, cheap VPU iota)
    row = jax.lax.broadcasted_iota(jnp.int32, (T, T), 0)
    col = jax.lax.broadcasted_iota(jnp.int32, (T, T), 1)
    causal = jnp.where(row >= col, 0.0, -1e30).astype(jnp.float32)

    # ---- self-attention branch ----
    h = _layernorm_masked(x, ln1w_ref[0], ln1b_ref[0], c_real)
    qkv = jnp.dot(h.astype(jnp.bfloat16), wqkv_ref[0],
                  preferred_element_type=jnp.float32)       # (T, 3*H*hs_p), fused QKV

    for hd in range(n_heads):              # static loop; all slices 128-lane aligned
        q = qkv[:, hd * hs_p:(hd + 1) * hs_p].astype(jnp.bfloat16)
        k = qkv[:, htot + hd * hs_p: htot + (hd + 1) * hs_p].astype(jnp.bfloat16)
        v = qkv[:, 2 * htot + hd * hs_p: 2 * htot + (hd + 1) * hs_p].astype(jnp.bfloat16)
        s = jax.lax.dot_general(q, k, (((1,), (1,)), ((), ())),
                                preferred_element_type=jnp.float32)   # (T, T)
        s = s + causal                     # 1/sqrt(hs) already folded into W_q
        s = s - jnp.max(s, axis=-1, keepdims=True)
        p = jnp.exp(s)
        p = p * pl.reciprocal(jnp.sum(p, axis=-1, keepdims=True), approx=True)
        ctx = jnp.dot(p.astype(jnp.bfloat16), v,
                      preferred_element_type=jnp.float32)             # (T, hs_p)
        sa_ref[:, hd * hs_p:(hd + 1) * hs_p] = ctx                    # aligned store

    sa = jnp.dot(sa_ref[...].astype(jnp.bfloat16), wo_ref[0],
                 preferred_element_type=jnp.float32) + bo_ref[0]
    x = x + sa                             # residual (dropout = identity)

    # ---- feed-forward branch ----
    h2 = _layernorm_masked(x, ln2w_ref[0], ln2b_ref[0], c_real)
    f = jnp.dot(h2.astype(jnp.bfloat16), w1_ref[0],
                preferred_element_type=jnp.float32) + b1_ref[0]
    f = jnp.maximum(f, 0.0)
    f = jnp.dot(f.astype(jnp.bfloat16), w2_ref[0],
                preferred_element_type=jnp.float32) + b2_ref[0]
    x = x + f                              # residual (dropout = identity)

    o_ref[...] = x

    @pl.when(layer == n_layers - 1)        # hoisted final LayerNorm (ln_f)
    def _():
        o_ref[...] = _layernorm_masked(x, lnfw_ref[...], lnfb_ref[...], c_real)


def head_kernel(x_ref, wh_ref, bh_ref, o_ref):
    """lm_head projection for one vocab tile (LN already applied upstream)."""
    o_ref[...] = jnp.dot(x_ref[...].astype(jnp.bfloat16), wh_ref[...],
                         preferred_element_type=jnp.float32) + bh_ref[...]


def run_blocks(x2d, st, lnf_w, lnf_b, n_heads, c_real, seq):
    M, Cp = x2d.shape
    B = M // seq
    L = st['wqkv'].shape[0]
    qkv_n = st['wqkv'].shape[2]
    wo_k = st['wo'].shape[1]
    hd_p = st['w1'].shape[2]

    def fixed(shape):
        return pl.BlockSpec(shape, lambda b, l, _n=len(shape): (0,) * _n)

    def per_layer(shape):
        return pl.BlockSpec((1,) + shape, lambda b, l, _n=len(shape): (l,) + (0,) * _n)

    # Explicit VMEM budget: double-buffered stacked-layer weights + activation blocks.
    wbytes = sum(int(v.nbytes) // L for v in st.values())
    act_bytes = seq * Cp * 4 * 4 + seq * (qkv_n + wo_k) * 4
    vmem_limit = int(min(128 << 20, max(16 << 20, 2 * wbytes + 4 * act_bytes + (4 << 20))))

    grid_spec = pltpu.PrefetchScalarGridSpec(
        num_scalar_prefetch=0,
        grid=(B, L),                       # batch parallel (v7x 2 TCs), layer arbitrary
        in_specs=[
            pl.BlockSpec((seq, Cp), lambda b, l: (b, 0)),   # x (consumed at layer 0)
            per_layer((1, Cp)),            # ln1w
            per_layer((1, Cp)),            # ln1b
            per_layer((Cp, qkv_n)),        # fused, head-padded W_qkv (scale folded)
            per_layer((wo_k, Cp)),         # wo (head-padded rows)
            per_layer((1, Cp)),            # bo
            per_layer((1, Cp)),            # ln2w
            per_layer((1, Cp)),            # ln2b
            per_layer((Cp, hd_p)),         # w1
            per_layer((1, hd_p)),          # b1
            per_layer((hd_p, Cp)),         # w2
            per_layer((1, Cp)),            # b2
            fixed((1, Cp)),                # lnf_w
            fixed((1, Cp)),                # lnf_b
        ],
        out_specs=pl.BlockSpec((seq, Cp), lambda b, l: (b, 0)),   # resident across layers
        scratch_shapes=[pltpu.VMEM((seq, wo_k), jnp.float32)],    # per-head output slab
    )
    return pl.pallas_call(
        functools.partial(blocks_kernel, n_heads, c_real),
        out_shape=jax.ShapeDtypeStruct((M, Cp), jnp.float32),
        grid_spec=grid_spec,
        compiler_params=pltpu.CompilerParams(
            dimension_semantics=("parallel", "arbitrary"),
            vmem_limit_bytes=vmem_limit),
    )(x2d, st['ln1w'], st['ln1b'], st['wqkv'], st['wo'], st['bo'],
      st['ln2w'], st['ln2b'], st['w1'], st['b1'], st['w2'], st['b2'],
      lnf_w, lnf_b)


def run_head(x2d, wh, bh, tile_v=512):
    M, Cp = x2d.shape
    Vp = wh.shape[1]
    tile_v = min(tile_v, Vp)
    if Vp % tile_v:
        tile_v = 128
    vmem_limit = int(min(128 << 20,
                         max(16 << 20,
                             2 * (Cp * tile_v * 2 + M * tile_v * 4 + tile_v * 4)
                             + 2 * M * Cp * 4 + (4 << 20))))
    grid_spec = pltpu.PrefetchScalarGridSpec(
        num_scalar_prefetch=0,
        grid=(Vp // tile_v,),
        in_specs=[
            pl.BlockSpec((M, Cp), lambda v: (0, 0)),        # normalized activations
            pl.BlockSpec((Cp, tile_v), lambda v: (0, v)),   # wh tile
            pl.BlockSpec((1, tile_v), lambda v: (0, v)),    # bh tile
        ],
        out_specs=pl.BlockSpec((M, tile_v), lambda v: (0, v)),
    )
    return pl.pallas_call(
        head_kernel,
        out_shape=jax.ShapeDtypeStruct((M, Vp), jnp.float32),
        grid_spec=grid_spec,
        compiler_params=pltpu.CompilerParams(
            dimension_semantics=("parallel",),
            vmem_limit_bytes=vmem_limit),
    )(x2d, wh, bh)


# ----------------------------- parameters ------------------------------------

def init_params(key, vocab_size, block_size, n_embed, n_heads, n_layers):
    """Logical (unpadded, f32) parameters; used both by the reference and packing."""
    C = n_embed
    keys = jax.random.split(key, 4 + n_layers)
    ref = {
        'tok_emb': (jax.random.normal(keys[0], (vocab_size, C)) * 0.02).astype(jnp.float32),
        'pos_emb': (jax.random.normal(keys[1], (block_size, C)) * 0.02).astype(jnp.float32),
        'lnf_w': jnp.ones((C,), jnp.float32),
        'lnf_b': jnp.zeros((C,), jnp.float32),
        'wh': (jax.random.normal(keys[2], (C, vocab_size)) * 0.02).astype(jnp.float32),
        'bh': jnp.zeros((vocab_size,), jnp.float32),
        'layers': [],
    }
    for l in range(n_layers):
        bk = jax.random.split(keys[4 + l], 6)
        ref['layers'].append({
            'ln1w': jnp.ones((C,), jnp.float32), 'ln1b': jnp.zeros((C,), jnp.float32),
            'wq': (jax.random.normal(bk[0], (C, C)) * 0.02).astype(jnp.float32),
            'wk': (jax.random.normal(bk[1], (C, C)) * 0.02).astype(jnp.float32),
            'wv': (jax.random.normal(bk[2], (C, C)) * 0.02).astype(jnp.float32),
            'wo': (jax.random.normal(bk[3], (C, C)) * 0.02).astype(jnp.float32),
            'bo': jnp.zeros((C,), jnp.float32),
            'ln2w': jnp.ones((C,), jnp.float32), 'ln2b': jnp.zeros((C,), jnp.float32),
            'w1': (jax.random.normal(bk[4], (C, 4 * C)) * 0.02).astype(jnp.float32),
            'b1': jnp.zeros((4 * C,), jnp.float32),
            'w2': (jax.random.normal(bk[5], (4 * C, C)) * 0.02).astype(jnp.float32),
            'b2': jnp.zeros((C,), jnp.float32),
        })
    return ref


def pack_params(ref, n_heads):
    """Pad to lane-dense shapes, fold scale into W_q, stack per-layer weights."""
    C = ref['tok_emb'].shape[1]
    vocab = ref['wh'].shape[1]
    Cp = _round_up(C, 128)
    hs = C // n_heads
    hs_p = _round_up(hs, 128)          # each head gets a 128-aligned lane slot
    Hd = 4 * C
    Hd_p = _round_up(Hd, 128)
    Vp = _round_up(vocab, 128)
    scale = hs ** -0.5

    def padc(v, width):                # (n,) -> (1, width), zero-padded
        return jnp.zeros((1, width), jnp.float32).at[0, :v.shape[0]].set(v)

    def pad2(w, rows, cols):
        return jnp.zeros((rows, cols), jnp.float32).at[:w.shape[0], :w.shape[1]].set(w)

    st = {k: [] for k in ('ln1w', 'ln1b', 'wqkv', 'wo', 'bo',
                          'ln2w', 'ln2b', 'w1', 'b1', 'w2', 'b2')}
    for lyr in ref['layers']:
        wqkv = jnp.zeros((Cp, 3 * n_heads * hs_p), jnp.float32)
        for s, (w, sc) in enumerate(((lyr['wq'], scale), (lyr['wk'], 1.0), (lyr['wv'], 1.0))):
            for h in range(n_heads):
                col0 = (s * n_heads + h) * hs_p
                wqkv = wqkv.at[:C, col0:col0 + hs].set(w[:, h * hs:(h + 1) * hs] * sc)
        wo = jnp.zeros((n_heads * hs_p, Cp), jnp.float32)
        for h in range(n_heads):
            wo = wo.at[h * hs_p:h * hs_p + hs, :C].set(lyr['wo'][h * hs:(h + 1) * hs, :])
        st['ln1w'].append(padc(lyr['ln1w'], Cp)); st['ln1b'].append(padc(lyr['ln1b'], Cp))
        st['wqkv'].append(wqkv); st['wo'].append(wo); st['bo'].append(padc(lyr['bo'], Cp))
        st['ln2w'].append(padc(lyr['ln2w'], Cp)); st['ln2b'].append(padc(lyr['ln2b'], Cp))
        st['w1'].append(pad2(lyr['w1'], Cp, Hd_p)); st['b1'].append(padc(lyr['b1'], Hd_p))
        st['w2'].append(pad2(lyr['w2'], Hd_p, Cp)); st['b2'].append(padc(lyr['b2'], Cp))

    stack = {}
    for k, v in st.items():
        arr = jnp.stack(v)
        stack[k] = arr.astype(jnp.bfloat16) if k in ('wqkv', 'wo', 'w1', 'w2') else arr

    return {
        'tok_emb': ref['tok_emb'],
        'pos_emb': ref['pos_emb'],
        'lnf_w': padc(ref['lnf_w'], Cp),
        'lnf_b': padc(ref['lnf_b'], Cp),
        'wh': pad2(ref['wh'], Cp, Vp).astype(jnp.bfloat16),
        'bh': padc(ref['bh'], Vp),
        'stack': stack,
        'meta': {'C': C, 'Cp': Cp, 'n_heads': n_heads, 'vocab': vocab},
    }


# ----------------------------- forward ---------------------------------------

def bigram_forward(params, inputs, targets=None):
    """Matches BigramLanguageModel.forward: returns (logits, loss)."""
    meta = params['meta']
    B, T = inputs.shape
    C, Cp = meta['C'], meta['Cp']
    # Embedding gathers kept in plain JAX glue (table lookups, not a matmul hot path).
    tok = jnp.take(params['tok_emb'], inputs, axis=0)            # (B, T, C)
    pos = params['pos_emb'][:T]                                  # (T, C)
    x = (tok + pos[None, :, :]).reshape(B * T, C)
    x = jnp.pad(x, ((0, 0), (0, Cp - C)))                        # lane-dense (zeros)
    x = run_blocks(x, params['stack'], params['lnf_w'], params['lnf_b'],
                   meta['n_heads'], C, T)                        # includes ln_f
    logits_pad = run_head(x, params['wh'], params['bh'])         # (B*T, Vp)
    logits = logits_pad[:, :meta['vocab']].reshape(B, T, meta['vocab'])
    if targets is None:
        loss = None
    else:
        # TODO(synk): cross-entropy loss kept in plain JAX (not a Pallas hot path).
        flat = logits.reshape(-1, meta['vocab'])
        lse = jax.nn.logsumexp(flat, axis=-1)
        picked = jnp.take_along_axis(flat, targets.reshape(-1, 1), axis=-1)[:, 0]
        loss = jnp.mean(lse - picked)
    return logits, loss


# ----------------------------- pure-JAX reference ----------------------------

def _ln_ref(x, w, b, eps=1e-5):
    mean = jnp.mean(x, axis=-1, keepdims=True)
    var = jnp.mean(jnp.square(x - mean), axis=-1, keepdims=True)
    return (x - mean) * jax.lax.rsqrt(var + eps) * w + b


def reference_forward(ref, inputs, n_heads):
    B, T = inputs.shape
    C = ref['tok_emb'].shape[1]
    hs = C // n_heads
    x = jnp.take(ref['tok_emb'], inputs, axis=0) + ref['pos_emb'][:T][None]
    mask = jnp.tril(jnp.ones((T, T), dtype=bool))
    for lyr in ref['layers']:
        h = _ln_ref(x, lyr['ln1w'], lyr['ln1b'])
        q = (h @ lyr['wq']).reshape(B, T, n_heads, hs).transpose(0, 2, 1, 3)
        k = (h @ lyr['wk']).reshape(B, T, n_heads, hs).transpose(0, 2, 1, 3)
        v = (h @ lyr['wv']).reshape(B, T, n_heads, hs).transpose(0, 2, 1, 3)
        s = (q @ jnp.swapaxes(k, -1, -2)) * hs ** -0.5
        s = jnp.where(mask, s, -jnp.inf)
        p = jax.nn.softmax(s, axis=-1)
        ctx = (p @ v).transpose(0, 2, 1, 3).reshape(B, T, C)
        x = x + ctx @ lyr['wo'] + lyr['bo']
        h2 = _ln_ref(x, lyr['ln2w'], lyr['ln2b'])
        x = x + jnp.maximum(h2 @ lyr['w1'] + lyr['b1'], 0.0) @ lyr['w2'] + lyr['b2']
    x = _ln_ref(x, ref['lnf_w'], ref['lnf_b'])
    return x @ ref['wh'] + ref['bh']


if __name__ == "__main__":
    vocab_size, block_size, n_embed, n_heads, n_layers, dropout = 64, 8, 32, 4, 2, 0.0
    B = 2

    key = jax.random.PRNGKey(0)
    pkey, ikey = jax.random.split(key)
    ref = init_params(pkey, vocab_size, block_size, n_embed, n_heads, n_layers)
    params = pack_params(ref, n_heads)
    inputs = jax.random.randint(ikey, (B, block_size), 0, vocab_size, dtype=jnp.int32)

    logits, loss = bigram_forward(params, inputs, targets=None)
    logits = jax.block_until_ready(logits)

    assert logits.shape == (B, block_size, vocab_size)
    assert logits.dtype == jnp.float32
    assert bool(jnp.all(jnp.isfinite(logits)))

    expected = reference_forward(ref, inputs, n_heads)
    err = float(jnp.max(jnp.abs(logits - expected)))
    assert err < 2e-2, f"max abs error vs f32 reference: {err}"
    print("KERNEL_OK")
</pallas_src>

<mosaic_0001>
module attributes {stable_mosaic.version = 11 : i64} {
  func.func @blocks_kernel(%arg0: i32, %arg1: i32, %arg2: memref<8x128xf32, #tpu.memory_space<vmem>>, %arg3: memref<1x1x128xf32, #tpu.memory_space<vmem>>, %arg4: memref<1x1x128xf32, #tpu.memory_space<vmem>>, %arg5: memref<1x128x1536xbf16, #tpu.memory_space<vmem>>, %arg6: memref<1x512x128xbf16, #tpu.memory_space<vmem>>, %arg7: memref<1x1x128xf32, #tpu.memory_space<vmem>>, %arg8: memref<1x1x128xf32, #tpu.memory_space<vmem>>, %arg9: memref<1x1x128xf32, #tpu.memory_space<vmem>>, %arg10: memref<1x128x128xbf16, #tpu.memory_space<vmem>>, %arg11: memref<1x1x128xf32, #tpu.memory_space<vmem>>, %arg12: memref<1x128x128xbf16, #tpu.memory_space<vmem>>, %arg13: memref<1x1x128xf32, #tpu.memory_space<vmem>>, %arg14: memref<1x128xf32, #tpu.memory_space<vmem>>, %arg15: memref<1x128xf32, #tpu.memory_space<vmem>>, %arg16: memref<8x128xf32, #tpu.memory_space<vmem>>, %arg17: memref<8x512xf32, #tpu.memory_space<vmem>>) attributes {dimension_semantics = [#tpu.dimension_semantics<parallel>, #tpu.dimension_semantics<arbitrary>], iteration_bounds = array<i64: 2, 2>, scalar_prefetch = 0 : i64, scratch_operands = 1 : i64, tpu.core_type = #tpu.core_type<tc>, window_params = [{transform_indices = @transform_0, window_bounds = array<i64: 8, 128>}, {transform_indices = @transform_1, window_bounds = array<i64: 1, 1, 128>}, {transform_indices = @transform_2, window_bounds = array<i64: 1, 1, 128>}, {transform_indices = @transform_3, window_bounds = array<i64: 1, 128, 1536>}, {transform_indices = @transform_4, window_bounds = array<i64: 1, 512, 128>}, {transform_indices = @transform_5, window_bounds = array<i64: 1, 1, 128>}, {transform_indices = @transform_6, window_bounds = array<i64: 1, 1, 128>}, {transform_indices = @transform_7, window_bounds = array<i64: 1, 1, 128>}, {transform_indices = @transform_8, window_bounds = array<i64: 1, 128, 128>}, {transform_indices = @transform_9, window_bounds = array<i64: 1, 1, 128>}, {transform_indices = @transform_10, window_bounds = array<i64: 1, 128, 128>}, {transform_indices = @transform_11, window_bounds = array<i64: 1, 1, 128>}, {pipeline_mode = #tpu.pipeline_mode<synchronous>, transform_indices = @transform_12, window_bounds = array<i64: 1, 128>}, {pipeline_mode = #tpu.pipeline_mode<synchronous>, transform_indices = @transform_13, window_bounds = array<i64: 1, 128>}, {transform_indices = @transform_14, window_bounds = array<i64: 8, 128>}]} {
    %c0_i32 = arith.constant 0 : i32
    %0 = arith.cmpi eq, %arg1, %c0_i32 : i32
    %1 = arith.extui %0 : i1 to i32
    %c0_i32_0 = arith.constant 0 : i32
    %2 = arith.cmpi ne, %1, %c0_i32_0 : i32
    scf.if %2 {
      %c0_80 = arith.constant 0 : index
      %c0_81 = arith.constant 0 : index
      %189 = vector.load %arg2[%c0_80, %c0_81] : memref<8x128xf32, #tpu.memory_space<vmem>>, vector<8x128xf32>
      %c0_82 = arith.constant 0 : index
      %c0_83 = arith.constant 0 : index
      %190 = vector.load %arg16[%c0_82, %c0_83] : memref<8x128xf32, #tpu.memory_space<vmem>>, vector<8x128xf32>
      tpu.vector_store %arg16[%c0_82, %c0_83], %189 {strides = array<i32>} : memref<8x128xf32, #tpu.memory_space<vmem>>, vector<8x128xf32>,
    } else {
    }
    %c0 = arith.constant 0 : index
    %c0_1 = arith.constant 0 : index
    %3 = vector.load %arg16[%c0, %c0_1] : memref<8x128xf32, #tpu.memory_space<vmem>>, vector<8x128xf32>
    %4 = tpu.iota {dimensions = array<i32: 0>} : vector<8x8xi32>
    %5 = tpu.iota {dimensions = array<i32: 1>} : vector<8x8xi32>
    %6 = arith.cmpi sge, %4, %5 : vector<8x8xi32>
    %cst = arith.constant 0.000000e+00 : f32
    %cst_2 = arith.constant -1.000000e+30 : f32
    %7 = vector.broadcast %cst : f32 to vector<8x8xf32>
    %8 = vector.broadcast %cst_2 : f32 to vector<8x8xf32>
    %9 = arith.select %6, %7, %8 : vector<8x8xi1>, vector<8x8xf32>
    %c0_3 = arith.constant 0 : index
    %c0_4 = arith.constant 0 : index
    %c0_5 = arith.constant 0 : index
    %10 = vector.load %arg3[%c0_3, %c0_4, %c0_5] : memref<1x1x128xf32, #tpu.memory_space<vmem>>, vector<1x1x128xf32>
    %11 = vector.shape_cast %10 : vector<1x1x128xf32> to vector<1x128xf32>
    %c0_6 = arith.constant 0 : index
    %c0_7 = arith.constant 0 : index
    %c0_8 = arith.constant 0 : index
    %12 = vector.load %arg4[%c0_6, %c0_7, %c0_8] : memref<1x1x128xf32, #tpu.memory_space<vmem>>, vector<1x1x128xf32>
    %13 = vector.shape_cast %12 : vector<1x1x128xf32> to vector<1x128xf32>
    %14 = tpu.iota {dimensions = array<i32: 1>} : vector<8x128xi32>
    %c32_i32 = arith.constant 32 : i32
    %15 = vector.broadcast %c32_i32 : i32 to vector<8x128xi32>
    %16 = arith.cmpi slt, %14, %15 : vector<8x128xi32>
    %cst_9 = arith.constant dense<0.000000e+00> : vector<8xf32>
    %17 = vector.multi_reduction <add>, %3, %cst_9 [1] : vector<8x128xf32> to vector<8xf32>
    %18 = vector.shape_cast %17 : vector<8xf32> to vector<8x1xf32>
    %cst_10 = arith.constant 3.125000e-02 : f32
    %19 = vector.broadcast %cst_10 : f32 to vector<8x1xf32>
    %20 = arith.mulf %18, %19 : vector<8x1xf32>
    %21 = vector.broadcast %20 : vector<8x1xf32> to vector<8x128xf32>
    %22 = arith.subf %3, %21 : vector<8x128xf32>
    %cst_11 = arith.constant 0.000000e+00 : f32
    %23 = vector.broadcast %cst_11 : f32 to vector<8x128xf32>
    %24 = arith.select %16, %22, %23 : vector<8x128xi1>, vector<8x128xf32>
    %25 = arith.mulf %24, %24 : vector<8x128xf32>
    %cst_12 = arith.constant dense<0.000000e+00> : vector<8xf32>
    %26 = vector.multi_reduction <add>, %25, %cst_12 [1] : vector<8x128xf32> to vector<8xf32>
    %27 = vector.shape_cast %26 : vector<8xf32> to vector<8x1xf32>
    %cst_13 = arith.constant 3.125000e-02 : f32
    %28 = vector.broadcast %cst_13 : f32 to vector<8x1xf32>
    %29 = arith.mulf %27, %28 : vector<8x1xf32>
    %cst_14 = arith.constant 9.99999974E-6 : f32
    %30 = vector.broadcast %cst_14 : f32 to vector<8x1xf32>
    %31 = arith.addf %29, %30 : vector<8x1xf32>
    %32 = math.rsqrt %31 : vector<8x1xf32>
    %33 = vector.broadcast %32 : vector<8x1xf32> to vector<8x128xf32>
    %34 = arith.mulf %24, %33 : vector<8x128xf32>
    %35 = vector.broadcast %11 : vector<1x128xf32> to vector<8x128xf32>
    %36 = arith.mulf %34, %35 : vector<8x128xf32>
    %37 = vector.broadcast %13 : vector<1x128xf32> to vector<8x128xf32>
    %38 = arith.addf %36, %37 : vector<8x128xf32>
    %39 = arith.truncf %38 : vector<8x128xf32> to vector<8x128xbf16>
    %c0_15 = arith.constant 0 : index
    %c0_16 = arith.constant 0 : index
    %c0_17 = arith.constant 0 : index
    %40 = vector.load %arg5[%c0_15, %c0_16, %c0_17] : memref<1x128x1536xbf16, #tpu.memory_space<vmem>>, vector<1x128x1536xbf16>
    %41 = vector.shape_cast %40 : vector<1x128x1536xbf16> to vector<128x1536xbf16>
    %cst_18 = arith.constant dense<0.000000e+00> : vector<8x1536xf32>
    %42 = tpu.matmul %39, %41, %cst_18 {dimension_numbers = #tpu.dot_dimension_numbers<[1], [0], [0], [1], [0, 0, 1, 1], [], []>} : vector<8x128xbf16>, vector<128x1536xbf16>, vector<8x1536xf32> -> vector<8x1536xf32>
    %43 = vector.extract_strided_slice %42 {offsets = [0, 0], sizes = [8, 128], strides = [1, 1]} : vector<8x1536xf32> to vector<8x128xf32>
    %44 = arith.truncf %43 : vector<8x128xf32> to vector<8x128xbf16>
    %45 = vector.extract_strided_slice %42 {offsets = [0, 512], sizes = [8, 128], strides = [1, 1]} : vector<8x1536xf32> to vector<8x128xf32>
    %46 = arith.truncf %45 : vector<8x128xf32> to vector<8x128xbf16>
    %47 = vector.extract_strided_slice %42 {offsets = [0, 1024], sizes = [8, 128], strides = [1, 1]} : vector<8x1536xf32> to vector<8x128xf32>
    %48 = arith.truncf %47 : vector<8x128xf32> to vector<8x128xbf16>
    %cst_19 = arith.constant dense<0.000000e+00> : vector<8x8xf32>
    %49 = tpu.matmul %44, %46, %cst_19 {dimension_numbers = #tpu.dot_dimension_numbers<[1], [1], [0], [0], [0, 0, 1, 0], [], []>} : vector<8x128xbf16>, vector<8x128xbf16>, vector<8x8xf32> -> vector<8x8xf32>
    %50 = arith.addf %49, %9 : vector<8x8xf32>
    %cst_20 = arith.constant dense<0xFF800000> : vector<8xf32>
    %51 = vector.multi_reduction <maximumf>, %50, %cst_20 [1] : vector<8x8xf32> to vector<8xf32>
    %52 = vector.shape_cast %51 : vector<8xf32> to vector<8x1xf32>
    %53 = vector.broadcast %52 : vector<8x1xf32> to vector<8x8xf32>
    %54 = arith.subf %50, %53 : vector<8x8xf32>
    %55 = math.exp %54 : vector<8x8xf32>
    %cst_21 = arith.constant dense<0.000000e+00> : vector<8xf32>
    %56 = vector.multi_reduction <add>, %55, %cst_21 [1] : vector<8x8xf32> to vector<8xf32>
    %57 = vector.shape_cast %56 : vector<8xf32> to vector<8x1xf32>
    %58 = tpu.reciprocal %57 {approx = true} : vector<8x1xf32> -> vector<8x1xf32>
    %59 = vector.broadcast %58 : vector<8x1xf32> to vector<8x8xf32>
    %60 = arith.mulf %55, %59 : vector<8x8xf32>
    %61 = arith.truncf %60 : vector<8x8xf32> to vector<8x8xbf16>
    %cst_22 = arith.constant dense<0.000000e+00> : vector<8x128xf32>
    %62 = tpu.matmul %61, %48, %cst_22 {dimension_numbers = #tpu.dot_dimension_numbers<[1], [0], [0], [1], [0, 0, 1, 1], [], []>} : vector<8x8xbf16>, vector<8x128xbf16>, vector<8x128xf32> -> vector<8x128xf32>
    %c0_23 = arith.constant 0 : index
    %c0_24 = arith.constant 0 : index
    %63 = vector.load %arg17[%c0_23, %c0_24] : memref<8x512xf32, #tpu.memory_space<vmem>>, vector<8x128xf32>
    tpu.vector_store %arg17[%c0_23, %c0_24], %62 {strides = array<i32>} : memref<8x512xf32, #tpu.memory_space<vmem>>, vector<8x128xf32>,
    %64 = vector.extract_strided_slice %42 {offsets = [0, 128], sizes = [8, 128], strides = [1, 1]} : vector<8x1536xf32> to vector<8x128xf32>
    %65 = arith.truncf %64 : vector<8x128xf32> to vector<8x128xbf16>
    %66 = vector.extract_strided_slice %42 {offsets = [0, 640], sizes = [8, 128], strides = [1, 1]} : vector<8x1536xf32> to vector<8x128xf32>
    %67 = arith.truncf %66 : vector<8x128xf32> to vector<8x128xbf16>
    %68 = vector.extract_strided_slice %42 {offsets = [0, 1152], sizes = [8, 128], strides = [1, 1]} : vector<8x1536xf32> to vector<8x128xf32>
    %69 = arith.truncf %68 : vector<8x128xf32> to vector<8x128xbf16>
    %cst_25 = arith.constant dense<0.000000e+00> : vector<8x8xf32>
    %70 = tpu.matmul %65, %67, %cst_25 {dimension_numbers = #tpu.dot_dimension_numbers<[1], [1], [0], [0], [0, 0, 1, 0], [], []>} : vector<8x128xbf16>, vector<8x128xbf16>, vector<8x8xf32> -> vector<8x8xf32>
    %71 = arith.addf %70, %9 : vector<8x8xf32>
    %cst_26 = arith.constant dense<0xFF800000> : vector<8xf32>
    %72 = vector.multi_reduction <maximumf>, %71, %cst_26 [1] : vector<8x8xf32> to vector<8xf32>
    %73 = vector.shape_cast %72 : vector<8xf32> to vector<8x1xf32>
    %74 = vector.broadcast %73 : vector<8x1xf32> to vector<8x8xf32>
    %75 = arith.subf %71, %74 : vector<8x8xf32>
    %76 = math.exp %75 : vector<8x8xf32>
    %cst_27 = arith.constant dense<0.000000e+00> : vector<8xf32>
    %77 = vector.multi_reduction <add>, %76, %cst_27 [1] : vector<8x8xf32> to vector<8xf32>
    %78 = vector.shape_cast %77 : vector<8xf32> to vector<8x1xf32>
    %79 = tpu.reciprocal %78 {approx = true} : vector<8x1xf32> -> vector<8x1xf32>
    %80 = vector.broadcast %79 : vector<8x1xf32> to vector<8x8xf32>
    %81 = arith.mulf %76, %80 : vector<8x8xf32>
    %82 = arith.truncf %81 : vector<8x8xf32> to vector<8x8xbf16>
    %cst_28 = arith.constant dense<0.000000e+00> : vector<8x128xf32>
    %83 = tpu.matmul %82, %69, %cst_28 {dimension_numbers = #tpu.dot_dimension_numbers<[1], [0], [0], [1], [0, 0, 1, 1], [], []>} : vector<8x8xbf16>, vector<8x128xbf16>, vector<8x128xf32> -> vector<8x128xf32>
    %c0_29 = arith.constant 0 : index
    %c128 = arith.constant 128 : index
    %84 = vector.load %arg17[%c0_29, %c128] : memref<8x512xf32, #tpu.memory_space<vmem>>, vector<8x128xf32>
    tpu.vector_store %arg17[%c0_29, %c128], %83 {strides = array<i32>} : memref<8x512xf32, #tpu.memory_space<vmem>>, vector<8x128xf32>,
    %85 = vector.extract_strided_slice %42 {offsets = [0, 256], sizes = [8, 128], strides = [1, 1]} : vector<8x1536xf32> to vector<8x128xf32>
    %86 = arith.truncf %85 : vector<8x128xf32> to vector<8x128xbf16>
    %87 = vector.extract_strided_slice %42 {offsets = [0, 768], sizes = [8, 128], strides = [1, 1]} : vector<8x1536xf32> to vector<8x128xf32>
    %88 = arith.truncf %87 : vector<8x128xf32> to vector<8x128xbf16>
    %89 = vector.extract_strided_slice %42 {offsets = [0, 1280], sizes = [8, 128], strides = [1, 1]} : vector<8x1536xf32> to vector<8x128xf32>
    %90 = arith.truncf %89 : vector<8x128xf32> to vector<8x128xbf16>
    %cst_30 = arith.constant dense<0.000000e+00> : vector<8x8xf32>
    %91 = tpu.matmul %86, %88, %cst_30 {dimension_numbers = #tpu.dot_dimension_numbers<[1], [1], [0], [0], [0, 0, 1, 0], [], []>} : vector<8x128xbf16>, vector<8x128xbf16>, vector<8x8xf32> -> vector<8x8xf32>
    %92 = arith.addf %91, %9 : vector<8x8xf32>
    %cst_31 = arith.constant dense<0xFF800000> : vector<8xf32>
    %93 = vector.multi_reduction <maximumf>, %92, %cst_31 [1] : vector<8x8xf32> to vector<8xf32>
    %94 = vector.shape_cast %93 : vector<8xf32> to vector<8x1xf32>
    %95 = vector.broadcast %94 : vector<8x1xf32> to vector<8x8xf32>
    %96 = arith.subf %92, %95 : vector<8x8xf32>
    %97 = math.exp %96 : vector<8x8xf32>
    %cst_32 = arith.constant dense<0.000000e+00> : vector<8xf32>
    %98 = vector.multi_reduction <add>, %97, %cst_32 [1] : vector<8x8xf32> to vector<8xf32>
    %99 = vector.shape_cast %98 : vector<8xf32> to vector<8x1xf32>
    %100 = tpu.reciprocal %99 {approx = true} : vector<8x1xf32> -> vector<8x1xf32>
    %101 = vector.broadcast %100 : vector<8x1xf32> to vector<8x8xf32>
    %102 = arith.mulf %97, %101 : vector<8x8xf32>
    %103 = arith.truncf %102 : vector<8x8xf32> to vector<8x8xbf16>
    %cst_33 = arith.constant dense<0.000000e+00> : vector<8x128xf32>
    %104 = tpu.matmul %103, %90, %cst_33 {dimension_numbers = #tpu.dot_dimension_numbers<[1], [0], [0], [1], [0, 0, 1, 1], [], []>} : vector<8x8xbf16>, vector<8x128xbf16>, vector<8x128xf32> -> vector<8x128xf32>
    %c0_34 = arith.constant 0 : index
    %c256 = arith.constant 256 : index
    %105 = vector.load %arg17[%c0_34, %c256] : memref<8x512xf32, #tpu.memory_space<vmem>>, vector<8x128xf32>
    tpu.vector_store %arg17[%c0_34, %c256], %104 {strides = array<i32>} : memref<8x512xf32, #tpu.memory_space<vmem>>, vector<8x128xf32>,
    %106 = vector.extract_strided_slice %42 {offsets = [0, 384], sizes = [8, 128], strides = [1, 1]} : vector<8x1536xf32> to vector<8x128xf32>
    %107 = arith.truncf %106 : vector<8x128xf32> to vector<8x128xbf16>
    %108 = vector.extract_strided_slice %42 {offsets = [0, 896], sizes = [8, 128], strides = [1, 1]} : vector<8x1536xf32> to vector<8x128xf32>
    %109 = arith.truncf %108 : vector<8x128xf32> to vector<8x128xbf16>
    %110 = vector.extract_strided_slice %42 {offsets = [0, 1408], sizes = [8, 128], strides = [1, 1]} : vector<8x1536xf32> to vector<8x128xf32>
    %111 = arith.truncf %110 : vector<8x128xf32> to vector<8x128xbf16>
    %cst_35 = arith.constant dense<0.000000e+00> : vector<8x8xf32>
    %112 = tpu.matmul %107, %109, %cst_35 {dimension_numbers = #tpu.dot_dimension_numbers<[1], [1], [0], [0], [0, 0, 1, 0], [], []>} : vector<8x128xbf16>, vector<8x128xbf16>, vector<8x8xf32> -> vector<8x8xf32>
    %113 = arith.addf %112, %9 : vector<8x8xf32>
    %cst_36 = arith.constant dense<0xFF800000> : vector<8xf32>
    %114 = vector.multi_reduction <maximumf>, %113, %cst_36 [1] : vector<8x8xf32> to vector<8xf32>
    %115 = vector.shape_cast %114 : vector<8xf32> to vector<8x1xf32>
    %116 = vector.broadcast %115 : vector<8x1xf32> to vector<8x8xf32>
    %117 = arith.subf %113, %116 : vector<8x8xf32>
    %118 = math.exp %117 : vector<8x8xf32>
    %cst_37 = arith.constant dense<0.000000e+00> : vector<8xf32>
    %119 = vector.multi_reduction <add>, %118, %cst_37 [1] : vector<8x8xf32> to vector<8xf32>
    %120 = vector.shape_cast %119 : vector<8xf32> to vector<8x1xf32>
    %121 = tpu.reciprocal %120 {approx = true} : vector<8x1xf32> -> vector<8x1xf32>
    %122 = vector.broadcast %121 : vector<8x1xf32> to vector<8x8xf32>
    %123 = arith.mulf %118, %122 : vector<8x8xf32>
    %124 = arith.truncf %123 : vector<8x8xf32> to vector<8x8xbf16>
    %cst_38 = arith.constant dense<0.000000e+00> : vector<8x128xf32>
    %125 = tpu.matmul %124, %111, %cst_38 {dimension_numbers = #tpu.dot_dimension_numbers<[1], [0], [0], [1], [0, 0, 1, 1], [], []>} : vector<8x8xbf16>, vector<8x128xbf16>, vector<8x128xf32> -> vector<8x128xf32>
    %c0_39 = arith.constant 0 : index
    %c384 = arith.constant 384 : index
    %126 = vector.load %arg17[%c0_39, %c384] : memref<8x512xf32, #tpu.memory_space<vmem>>, vector<8x128xf32>
    tpu.vector_store %arg17[%c0_39, %c384], %125 {strides = array<i32>} : memref<8x512xf32, #tpu.memory_space<vmem>>, vector<8x128xf32>,
    %c0_40 = arith.constant 0 : index
    %c0_41 = arith.constant 0 : index
    %127 = vector.load %arg17[%c0_40, %c0_41] : memref<8x512xf32, #tpu.memory_space<vmem>>, vector<8x512xf32>
    %128 = arith.truncf %127 : vector<8x512xf32> to vector<8x512xbf16>
    %c0_42 = arith.constant 0 : index
    %c0_43 = arith.constant 0 : index
    %c0_44 = arith.constant 0 : index
    %129 = vector.load %arg6[%c0_42, %c0_43, %c0_44] : memref<1x512x128xbf16, #tpu.memory_space<vmem>>, vector<1x512x128xbf16>
    %130 = vector.shape_cast %129 : vector<1x512x128xbf16> to vector<512x128xbf16>
    %cst_45 = arith.constant dense<0.000000e+00> : vector<8x128xf32>
    %131 = tpu.matmul %128, %130, %cst_45 {dimension_numbers = #tpu.dot_dimension_numbers<[1], [0], [0], [1], [0, 0, 1, 1], [], []>} : vector<8x512xbf16>, vector<512x128xbf16>, vector<8x128xf32> -> vector<8x128xf32>
    %c0_46 = arith.constant 0 : index
    %c0_47 = arith.constant 0 : index
    %c0_48 = arith.constant 0 : index
    %132 = vector.load %arg7[%c0_46, %c0_47, %c0_48] : memref<1x1x128xf32, #tpu.memory_space<vmem>>, vector<1x1x128xf32>
    %133 = vector.shape_cast %132 : vector<1x1x128xf32> to vector<1x128xf32>
    %134 = vector.broadcast %133 : vector<1x128xf32> to vector<8x128xf32>
    %135 = arith.addf %131, %134 : vector<8x128xf32>
    %136 = arith.addf %3, %135 : vector<8x128xf32>
    %c0_49 = arith.constant 0 : index
    %c0_50 = arith.constant 0 : index
    %c0_51 = arith.constant 0 : index
    %137 = vector.load %arg8[%c0_49, %c0_50, %c0_51] : memref<1x1x128xf32, #tpu.memory_space<vmem>>, vector<1x1x128xf32>
    %138 = vector.shape_cast %137 : vector<1x1x128xf32> to vector<1x128xf32>
    %c0_52 = arith.constant 0 : index
    %c0_53 = arith.constant 0 : index
    %c0_54 = arith.constant 0 : index
    %139 = vector.load %arg9[%c0_52, %c0_53, %c0_54] : memref<1x1x128xf32, #tpu.memory_space<vmem>>, vector<1x1x128xf32>
    %140 = vector.shape_cast %139 : vector<1x1x128xf32> to vector<1x128xf32>
    %141 = tpu.iota {dimensions = array<i32: 1>} : vector<8x128xi32>
    %c32_i32_55 = arith.constant 32 : i32
    %142 = vector.broadcast %c32_i32_55 : i32 to vector<8x128xi32>
    %143 = arith.cmpi slt, %141, %142 : vector<8x128xi32>
    %cst_56 = arith.constant dense<0.000000e+00> : vector<8xf32>
    %144 = vector.multi_reduction <add>, %136, %cst_56 [1] : vector<8x128xf32> to vector<8xf32>
    %145 = vector.shape_cast %144 : vector<8xf32> to vector<8x1xf32>
    %cst_57 = arith.constant 3.125000e-02 : f32
    %146 = vector.broadcast %cst_57 : f32 to vector<8x1xf32>
    %147 = arith.mulf %145, %146 : vector<8x1xf32>
    %148 = vector.broadcast %147 : vector<8x1xf32> to vector<8x128xf32>
    %149 = arith.subf %136, %148 : vector<8x128xf32>
    %cst_58 = arith.constant 0.000000e+00 : f32
    %150 = vector.broadcast %cst_58 : f32 to vector<8x128xf32>
    %151 = arith.select %143, %149, %150 : vector<8x128xi1>, vector<8x128xf32>
    %152 = arith.mulf %151, %151 : vector<8x128xf32>
    %cst_59 = arith.constant dense<0.000000e+00> : vector<8xf32>
    %153 = vector.multi_reduction <add>, %152, %cst_59 [1] : vector<8x128xf32> to vector<8xf32>
    %154 = vector.shape_cast %153 : vector<8xf32> to vector<8x1xf32>
    %cst_60 = arith.constant 3.125000e-02 : f32
    %155 = vector.broadcast %cst_60 : f32 to vector<8x1xf32>
    %156 = arith.mulf %154, %155 : vector<8x1xf32>
    %cst_61 = arith.constant 9.99999974E-6 : f32
    %157 = vector.broadcast %cst_61 : f32 to vector<8x1xf32>
    %158 = arith.addf %156, %157 : vector<8x1xf32>
    %159 = math.rsqrt %158 : vector<8x1xf32>
    %160 = vector.broadcast %159 : vector<8x1xf32> to vector<8x128xf32>
    %161 = arith.mulf %151, %160 : vector<8x128xf32>
    %162 = vector.broadcast %138 : vector<1x128xf32> to vector<8x128xf32>
    %163 = arith.mulf %161, %162 : vector<8x128xf32>
    %164 = vector.broadcast %140 : vector<1x128xf32> to vector<8x128xf32>
    %165 = arith.addf %163, %164 : vector<8x128xf32>
    %166 = arith.truncf %165 : vector<8x128xf32> to vector<8x128xbf16>
    %c0_62 = arith.constant 0 : index
    %c0_63 = arith.constant 0 : index
    %c0_64 = arith.constant 0 : index
    %167 = vector.load %arg10[%c0_62, %c0_63, %c0_64] : memref<1x128x128xbf16, #tpu.memory_space<vmem>>, vector<1x128x128xbf16>
    %168 = vector.shape_cast %167 : vector<1x128x128xbf16> to vector<128x128xbf16>
    %cst_65 = arith.constant dense<0.000000e+00> : vector<8x128xf32>
    %169 = tpu.matmul %166, %168, %cst_65 {dimension_numbers = #tpu.dot_dimension_numbers<[1], [0], [0], [1], [0, 0, 1, 1], [], []>} : vector<8x128xbf16>, vector<128x128xbf16>, vector<8x128xf32> -> vector<8x128xf32>
    %c0_66 = arith.constant 0 : index
    %c0_67 = arith.constant 0 : index
    %c0_68 = arith.constant 0 : index
    %170 = vector.load %arg11[%c0_66, %c0_67, %c0_68] : memref<1x1x128xf32, #tpu.memory_space<vmem>>, vector<1x1x128xf32>
    %171 = vector.shape_cast %170 : vector<1x1x128xf32> to vector<1x128xf32>
    %172 = vector.broadcast %171 : vector<1x128xf32> to vector<8x128xf32>
    %173 = arith.addf %169, %172 : vector<8x128xf32>
    %cst_69 = arith.constant 0.000000e+00 : f32
    %174 = vector.broadcast %cst_69 : f32 to vector<8x128xf32>
    %175 = arith.maximumf %173, %174 : vector<8x128xf32>
    %176 = arith.truncf %175 : vector<8x128xf32> to vector<8x128xbf16>
    %c0_70 = arith.constant 0 : index
    %c0_71 = arith.constant 0 : index
    %c0_72 = arith.constant 0 : index
    %177 = vector.load %arg12[%c0_70, %c0_71, %c0_72] : memref<1x128x128xbf16, #tpu.memory_space<vmem>>, vector<1x128x128xbf16>
    %178 = vector.shape_cast %177 : vector<1x128x128xbf16> to vector<128x128xbf16>
    %cst_73 = arith.constant dense<0.000000e+00> : vector<8x128xf32>
    %179 = tpu.matmul %176, %178, %cst_73 {dimension_numbers = #tpu.dot_dimension_numbers<[1], [0], [0], [1], [0, 0, 1, 1], [], []>} : vector<8x128xbf16>, vector<128x128xbf16>, vector<8x128xf32> -> vector<8x128xf32>
    %c0_74 = arith.constant 0 : index
    %c0_75 = arith.constant 0 : index
    %c0_76 = arith.constant 0 : index
    %180 = vector.load %arg13[%c0_74, %c0_75, %c0_76] : memref<1x1x128xf32, #tpu.memory_space<vmem>>, vector<1x1x128xf32>
    %181 = vector.shape_cast %180 : vector<1x1x128xf32> to vector<1x128xf32>
    %182 = vector.broadcast %181 : vector<1x128xf32> to vector<8x128xf32>
    %183 = arith.addf %179, %182 : vector<8x128xf32>
    %184 = arith.addf %136, %183 : vector<8x128xf32>
    %c0_77 = arith.constant 0 : index
    %c0_78 = arith.constant 0 : index
    %185 = vector.load %arg16[%c0_77, %c0_78] : memref<8x128xf32, #tpu.memory_space<vmem>>, vector<8x128xf32>
    tpu.vector_store %arg16[%c0_77, %c0_78], %184 {strides = array<i32>} : memref<8x128xf32, #tpu.memory_space<vmem>>, vector<8x128xf32>,
    %c1_i32 = arith.constant 1 : i32
    %186 = arith.cmpi eq, %arg1, %c1_i32 : i32
    %187 = arith.extui %186 : i1 to i32
    %c0_i32_79 = arith.constant 0 : i32
    %188 = arith.cmpi ne, %187, %c0_i32_79 : i32
    scf.if %188 {
      %c0_80 = arith.constant 0 : index
      %c0_81 = arith.constant 0 : index
      %189 = vector.load %arg14[%c0_80, %c0_81] : memref<1x128xf32, #tpu.memory_space<vmem>>, vector<1x128xf32>
      %c0_82 = arith.constant 0 : index
      %c0_83 = arith.constant 0 : index
      %190 = vector.load %arg15[%c0_82, %c0_83] : memref<1x128xf32, #tpu.memory_space<vmem>>, vector<1x128xf32>
      %191 = tpu.iota {dimensions = array<i32: 1>} : vector<8x128xi32>
      %c32_i32_84 = arith.constant 32 : i32
      %192 = vector.broadcast %c32_i32_84 : i32 to vector<8x128xi32>
      %193 = arith.cmpi slt, %191, %192 : vector<8x128xi32>
      %cst_85 = arith.constant dense<0.000000e+00> : vector<8xf32>
      %194 = vector.multi_reduction <add>, %184, %cst_85 [1] : vector<8x128xf32> to vector<8xf32>
      %195 = vector.shape_cast %194 : vector<8xf32> to vector<8x1xf32>
      %cst_86 = arith.constant 3.125000e-02 : f32
      %196 = vector.broadcast %cst_86 : f32 to vector<8x1xf32>
      %197 = arith.mulf %195, %196 : vector<8x1xf32>
      %198 = vector.broadcast %197 : vector<8x1xf32> to vector<8x128xf32>
      %199 = arith.subf %184, %198 : vector<8x128xf32>
      %cst_87 = arith.constant 0.000000e+00 : f32
      %200 = vector.broadcast %cst_87 : f32 to vector<8x128xf32>
      %201 = arith.select %193, %199, %200 : vector<8x128xi1>, vector<8x128xf32>
      %202 = arith.mulf %201, %201 : vector<8x128xf32>
      %cst_88 = arith.constant dense<0.000000e+00> : vector<8xf32>
      %203 = vector.multi_reduction <add>, %202, %cst_88 [1] : vector<8x128xf32> to vector<8xf32>
      %204 = vector.shape_cast %203 : vector<8xf32> to vector<8x1xf32>
      %cst_89 = arith.constant 3.125000e-02 : f32
      %205 = vector.broadcast %cst_89 : f32 to vector<8x1xf32>
      %206 = arith.mulf %204, %205 : vector<8x1xf32>
      %cst_90 = arith.constant 9.99999974E-6 : f32
      %207 = vector.broadcast %cst_90 : f32 to vector<8x1xf32>
      %208 = arith.addf %206, %207 : vector<8x1xf32>
      %209 = math.rsqrt %208 : vector<8x1xf32>
      %210 = vector.broadcast %209 : vector<8x1xf32> to vector<8x128xf32>
      %211 = arith.mulf %201, %210 : vector<8x128xf32>
      %212 = vector.broadcast %189 : vector<1x128xf32> to vector<8x128xf32>
      %213 = arith.mulf %211, %212 : vector<8x128xf32>
      %214 = vector.broadcast %190 : vector<1x128xf32> to vector<8x128xf32>
      %215 = arith.addf %213, %214 : vector<8x128xf32>
      %c0_91 = arith.constant 0 : index
      %c0_92 = arith.constant 0 : index
      %216 = vector.load %arg16[%c0_91, %c0_92] : memref<8x128xf32, #tpu.memory_space<vmem>>, vector<8x128xf32>
      tpu.vector_store %arg16[%c0_91, %c0_92], %215 {strides = array<i32>} : memref<8x128xf32, #tpu.memory_space<vmem>>, vector<8x128xf32>,
    } else {
    }
    return
  }
  func.func @transform_0(%arg0: i32, %arg1: i32) -> (i32, i32) {
    %c0_i32 = arith.constant 0 : i32
    %c0_i32_0 = arith.constant 0 : i32
    return %arg0, %c0_i32 : i32, i32
  }
  func.func @transform_1(%arg0: i32, %arg1: i32) -> (i32, i32, i32) {
    %c0_i32 = arith.constant 0 : i32
    %c0_i32_0 = arith.constant 0 : i32
    %c0_i32_1 = arith.constant 0 : i32
    return %arg1, %c0_i32, %c0_i32_0 : i32, i32, i32
  }
  func.func @transform_2(%arg0: i32, %arg1: i32) -> (i32, i32, i32) {
    %c0_i32 = arith.constant 0 : i32
    %c0_i32_0 = arith.constant 0 : i32
    %c0_i32_1 = arith.constant 0 : i32
    return %arg1, %c0_i32, %c0_i32_0 : i32, i32, i32
  }
  func.func @transform_3(%arg0: i32, %arg1: i32) -> (i32, i32, i32) {
    %c0_i32 = arith.constant 0 : i32
    %c0_i32_0 = arith.constant 0 : i32
    %c0_i32_1 = arith.constant 0 : i32
    return %arg1, %c0_i32, %c0_i32_0 : i32, i32, i32
  }
  func.func @transform_4(%arg0: i32, %arg1: i32) -> (i32, i32, i32) {
    %c0_i32 = arith.constant 0 : i32
    %c0_i32_0 = arith.constant 0 : i32
    %c0_i32_1 = arith.constant 0 : i32
    return %arg1, %c0_i32, %c0_i32_0 : i32, i32, i32
  }
  func.func @transform_5(%arg0: i32, %arg1: i32) -> (i32, i32, i32) {
    %c0_i32 = arith.constant 0 : i32
    %c0_i32_0 = arith.constant 0 : i32
    %c0_i32_1 = arith.constant 0 : i32
    return %arg1, %c0_i32, %c0_i32_0 : i32, i32, i32
  }
  func.func @transform_6(%arg0: i32, %arg1: i32) -> (i32, i32, i32) {
    %c0_i32 = arith.constant 0 : i32
    %c0_i32_0 = arith.constant 0 : i32
    %c0_i32_1 = arith.constant 0 : i32
    return %arg1, %c0_i32, %c0_i32_0 : i32, i32, i32
  }
  func.func @transform_7(%arg0: i32, %arg1: i32) -> (i32, i32, i32) {
    %c0_i32 = arith.constant 0 : i32
    %c0_i32_0 = arith.constant 0 : i32
    %c0_i32_1 = arith.constant 0 : i32
    return %arg1, %c0_i32, %c0_i32_0 : i32, i32, i32
  }
  func.func @transform_8(%arg0: i32, %arg1: i32) -> (i32, i32, i32) {
    %c0_i32 = arith.constant 0 : i32
    %c0_i32_0 = arith.constant 0 : i32
    %c0_i32_1 = arith.constant 0 : i32
    return %arg1, %c0_i32, %c0_i32_0 : i32, i32, i32
  }
  func.func @transform_9(%arg0: i32, %arg1: i32) -> (i32, i32, i32) {
    %c0_i32 = arith.constant 0 : i32
    %c0_i32_0 = arith.constant 0 : i32
    %c0_i32_1 = arith.constant 0 : i32
    return %arg1, %c0_i32, %c0_i32_0 : i32, i32, i32
  }
  func.func @transform_10(%arg0: i32, %arg1: i32) -> (i32, i32, i32) {
    %c0_i32 = arith.constant 0 : i32
    %c0_i32_0 = arith.constant 0 : i32
    %c0_i32_1 = arith.constant 0 : i32
    return %arg1, %c0_i32, %c0_i32_0 : i32, i32, i32
  }
  func.func @transform_11(%arg0: i32, %arg1: i32) -> (i32, i32, i32) {
    %c0_i32 = arith.constant 0 : i32
    %c0_i32_0 = arith.constant 0 : i32
    %c0_i32_1 = arith.constant 0 : i32
    return %arg1, %c0_i32, %c0_i32_0 : i32, i32, i32
  }
  func.func @transform_12(%arg0: i32, %arg1: i32) -> (i32, i32) {
    %c0_i32 = arith.constant 0 : i32
    %c0_i32_0 = arith.constant 0 : i32
    %c0_i32_1 = arith.constant 0 : i32
    return %c0_i32, %c0_i32_0 : i32, i32
  }
  func.func @transform_13(%arg0: i32, %arg1: i32) -> (i32, i32) {
    %c0_i32 = arith.constant 0 : i32
    %c0_i32_0 = arith.constant 0 : i32
    %c0_i32_1 = arith.constant 0 : i32
    return %c0_i32, %c0_i32_0 : i32, i32
  }
  func.func @transform_14(%arg0: i32, %arg1: i32) -> (i32, i32) {
    %c0_i32 = arith.constant 0 : i32
    %c0_i32_0 = arith.constant 0 : i32
    return %arg0, %c0_i32 : i32, i32
  }
}

</mosaic_0001>

<llo_original>
// kernel: tpu_custom_call.1
$region0: #{tpu_custom_call.1}
  #allocation0 [shape = 'u32[]', space=smem, size = 0x4, offset = 0x4, fixed_abs, tag = 'smem constant byte address 0x4 - core index']
  #allocation1 [shape = 'u32[72,128]{1,0:T(1,128)}', space=vmem, size = 0x9000, scoped, tag = 'internal scratch']
  #allocation2 [shape = 'f32[8,512]{1,0:T(8,128)}', space=vmem, size = 0x4000, scoped, tag = 'scratch operand']
  %s0 = inlined_call_operand.hbm [shape: f32[16,128], index: 0, kind: input, shape index: {}]
  %s1 = inlined_call_operand.hbm [shape: f32[2,1,128], index: 1, kind: input, shape index: {}]
  %s2 = inlined_call_operand.hbm [shape: f32[2,1,128], index: 2, kind: input, shape index: {}]
  %s3 = inlined_call_operand.hbm [shape: bf16[2,128,1536], index: 3, kind: input, shape index: {}]
  %s4 = inlined_call_operand.hbm [shape: bf16[2,512,128], index: 4, kind: input, shape index: {}]
  %s5 = inlined_call_operand.vmem [shape: f32[2,1,128], index: 5, kind: input, shape index: {}]
  %s6 = inlined_call_operand.vmem [shape: f32[2,1,128], index: 6, kind: input, shape index: {}]
  %s7 = inlined_call_operand.vmem [shape: f32[2,1,128], index: 7, kind: input, shape index: {}]
  %s8 = inlined_call_operand.hbm [shape: bf16[2,128,128], index: 8, kind: input, shape index: {}]
  %s9 = inlined_call_operand.vmem [shape: f32[2,1,128], index: 9, kind: input, shape index: {}]
  %s10 = inlined_call_operand.hbm [shape: bf16[2,128,128], index: 10, kind: input, shape index: {}]
  %s11 = inlined_call_operand.vmem [shape: f32[2,1,128], index: 11, kind: input, shape index: {}]
  %s12 = inlined_call_operand.vmem [shape: f32[1,128], index: 12, kind: input, shape index: {}]
  %s13 = inlined_call_operand.vmem [shape: f32[1,128], index: 13, kind: input, shape index: {}]
  %s14 = inlined_call_operand.hbm [shape: f32[16,128], index: 14, kind: output, shape index: {}]
  %s15 = sld [smem:[#allocation0]]
  $region125: #{tpu_custom_call.1} parent=0
    _
  %s17 = ssub.s32 1, %s15
  %s18 = scalar_select 0, %s17, %s15
  $region1: #{tpu_custom_call.1} parent=0
    #allocation3 [shape = 'u8[8192]{0}', space=vmem, size = 0x2000, scoped, tag = 'input window, operand 0']
    #allocation4 [shape = 's32[2]{0}', space=sflag, size = 0x8, scoped, tag = 'scoped memory for tpu_custom_call.1']
    #allocation5 [shape = 's32[2]{0}', space=sflag, size = 0x8, scoped, tag = 'scoped memory for tpu_custom_call.1']
    #allocation6 [shape = 'u8[1024]{0}', space=vmem, size = 0x400, scoped, tag = 'input window, operand 1']
    #allocation7 [shape = 's32[2]{0}', space=sflag, size = 0x8, scoped, tag = 'scoped memory for tpu_custom_call.1']
    #allocation8 [shape = 'u8[1024]{0}', space=vmem, size = 0x400, scoped, tag = 'input window, operand 2']
    #allocation9 [shape = 'u8[786432]{0}', space=vmem, size = 0xc0000, scoped, tag = 'input window, operand 3']
    #allocation10 [shape = 's32[2]{0}', space=sflag, size = 0x8, scoped, tag = 'scoped memory for tpu_custom_call.1']
    #allocation11 [shape = 'u8[262144]{0}', space=vmem, size = 0x40000, scoped, tag = 'input window, operand 4']
    #allocation12 [shape = 'u8[65536]{0}', space=vmem, size = 0x10000, scoped, tag = 'input window, operand 8']
    #allocation13 [shape = 's32[2]{0}', space=sflag, size = 0x8, scoped, tag = 'scoped memory for tpu_custom_call.1']
    #allocation14 [shape = 'u8[65536]{0}', space=vmem, size = 0x10000, scoped, tag = 'input window, operand 10']
    #allocation15 [shape = 'u8[8192]{0}', space=vmem, size = 0x2000, scoped, tag = 'output window, operand 0']
    %19 = vsyncpa [#allocation4], 0
    %s20 = scalar_lea.sflag [#allocation4], 1
    %21 = vsyncpa %s20, 0
    %22 = vsyncpa [#allocation7], 0
    %s23 = scalar_lea.sflag [#allocation7], 1
    %24 = vsyncpa %s23, 0
    %25 = vsyncpa [#allocation10], 0
    %s26 = scalar_lea.sflag [#allocation10], 1
    %27 = vsyncpa %s26, 0
    %28 = vsyncpa [#allocation13], 0
    %s29 = scalar_lea.sflag [#allocation13], 1
    %30 = vsyncpa %s29, 0
    %31 = vsyncpa [#allocation5], 0
    %s32 = scalar_lea.sflag [#allocation5], 1
    %33 = vsyncpa %s32, 0
    loop: start=0, step=1, limit=6
    $region2: #{tpu_custom_call.1} parent=1 // loop_pre_header
      _
    $region3: #{tpu_custom_call.1} parent=1 // loop_header
      %s35 = sphi 0, %s39
      %p36 = scmp.ge.s32.totalorder %s35, 6
      %s42 = sphi 0, %s54
      %s43 = sphi 0, %s50
      %s44 = sphi 0, %s42
      %s45 = sphi 0, %s43
      %s46 = sphi 0, %s44
      %s47 = sphi 0, %s45
      %s57 = sphi 0, %s59
      %s60 = sphi 0, %s57
      %s61 = sphi 0, %s60
      %s77 = sphi 0, %s61
      %s83 = sphi 0, %s85
      %s86 = sphi 0, %s83
      %s87 = sphi 0, %s86
      %s103 = sphi 0, %s87
      %s109 = sphi 0, %s111
      %s112 = sphi 0, %s109
      %s113 = sphi 0, %s112
      %s129 = sphi 0, %s113
      %s135 = sphi 0, %s137
      %s138 = sphi 0, %s135
      %s139 = sphi 0, %s138
      %s155 = sphi 0, %s139
      %s161 = sphi 0, %s163
      %s164 = sphi 0, %s161
      %s165 = sphi 0, %s164
      %s181 = sphi 0, %s165
      %s187 = sphi 0, %s189
      %s190 = sphi 0, %s187
      %s191 = sphi 0, %s190
      %s207 = sphi 0, %s191
      %s213 = sphi 0, %s215
      %s216 = sphi 0, %s213
      %s217 = sphi 0, %s216
      %s233 = sphi 0, %s217
      %s239 = sphi 0, %s241
      %s242 = sphi 0, %s239
      %s243 = sphi 0, %s242
      %s259 = sphi 0, %s243
      %s265 = sphi 0, %s267
      %s268 = sphi 0, %s265
      %s269 = sphi 0, %s268
      %s285 = sphi 0, %s269
      %s291 = sphi 0, %s293
      %s294 = sphi 0, %s291
      %s295 = sphi 0, %s294
      %s311 = sphi 0, %s295
      %s317 = sphi 0, %s319
      %s320 = sphi 0, %s317
      %s321 = sphi 0, %s320
      %s337 = sphi 0, %s321
      %s343 = sphi 0, %s345
      %s346 = sphi 0, %s343
      %s347 = sphi 0, %s346
      %s363 = sphi 0, %s347
      %s367 = sphi 0, %s367
      %s369 = sphi 0, %s367
      %s370 = sphi 0, %s369
      %s384 = sphi 0, %s370
      %s388 = sphi 0, %s388
      %s390 = sphi 0, %s388
      %s391 = sphi 0, %s390
      %s405 = sphi 0, %s391
      %s411 = sphi 0, %s413
      %s414 = sphi 0, %s411
      %s415 = sphi 0, %s414
      %s431 = sphi 0, %s415
    $region4: #{tpu_custom_call.1} parent=1 // loop_header_branch
      %38 = sbr.rel (%p36) target = $region8
    $region5: #{tpu_custom_call.1} parent=1 // loop_body
      %s40 = ssub.s32 %s35, 1
      %s41 = ssub.s32 %s35, 2
      %s48 = sadd.s32 1, %s43
      %p49 = scmp.ge.s32.totalorder %s48, 2
      %s50 = scalar_select %p49, 0, %s48
      %s51 = sadd.s32 1, %s42
      %s52 = scalar_select %p49, %s51, %s42
      %p53 = scmp.ge.s32.totalorder %s52, 2
      %s54 = scalar_select %p53, 0, %s52
      %s55 = ssub.s32 %s42, %s54
      %p56 = scmp.eq.s32.totalorder %s55, 0
      %s58 = sadd.s32 %s57, 1
      %s59 = scalar_select %p56, %s57, %s58
      %p62 = pneg %p56
      %p63 = scmp.eq.s32.totalorder %s35, 3
      %p64 = por %p62, %p63
      %p65 = scmp.ne.s32.totalorder %s57, %s60
      %p66 = scmp.eq.s32.totalorder %s35, 0
      %p67 = por %p65, %p66
      %p68 = scmp.ne.s32.totalorder %s57, %s60
      %p69 = scmp.eq.s32.totalorder %s40, 3
      %p70 = por %p68, %p69
      %p71 = scmp.ne.s32.totalorder %s60, %s61
      %p72 = scmp.eq.s32.totalorder %s40, 0
      %p73 = por %p71, %p72
      %p74 = scmp.ne.s32.totalorder %s60, %s61
      %p75 = scmp.eq.s32.totalorder %s41, 3
      %p76 = por %p74, %p75
      %p78 = scmp.ne.s32.totalorder %s61, %s77
      %p79 = scmp.eq.s32.totalorder %s41, 0
      %p80 = por %p78, %p79
      %s81 = ssub.s32 %s43, %s50
      %p82 = scmp.eq.s32.totalorder %s81, 0
      %s84 = sadd.s32 %s83, 1
      %s85 = scalar_select %p82, %s83, %s84
      %p88 = pneg %p82
      %p89 = scmp.eq.s32.totalorder %s35, 3
      %p90 = por %p88, %p89
      %p91 = scmp.ne.s32.totalorder %s83, %s86
      %p92 = scmp.eq.s32.totalorder %s35, 0
      %p93 = por %p91, %p92
      %p94 = scmp.ne.s32.totalorder %s83, %s86
      %p95 = scmp.eq.s32.totalorder %s40, 3
      %p96 = por %p94, %p95
      %p97 = scmp.ne.s32.totalorder %s86, %s87
      %p98 = scmp.eq.s32.totalorder %s40, 0
      %p99 = por %p97, %p98
      %p100 = scmp.ne.s32.totalorder %s86, %s87
      %p101 = scmp.eq.s32.totalorder %s41, 3
      %p102 = por %p100, %p101
      %p104 = scmp.ne.s32.totalorder %s87, %s103
      %p105 = scmp.eq.s32.totalorder %s41, 0
      %p106 = por %p104, %p105
      %s107 = ssub.s32 %s43, %s50
      %p108 = scmp.eq.s32.totalorder %s107, 0
      %s110 = sadd.s32 %s109, 1
      %s111 = scalar_select %p108, %s109, %s110
      %p114 = pneg %p108
      %p115 = scmp.eq.s32.totalorder %s35, 3
      %p116 = por %p114, %p115
      %p117 = scmp.ne.s32.totalorder %s109, %s112
      %p118 = scmp.eq.s32.totalorder %s35, 0
      %p119 = por %p117, %p118
      %p120 = scmp.ne.s32.totalorder %s109, %s112
      %p121 = scmp.eq.s32.totalorder %s40, 3
      %p122 = por %p120, %p121
      %p123 = scmp.ne.s32.totalorder %s112, %s113
      %p124 = scmp.eq.s32.totalorder %s40, 0
      %p125 = por %p123, %p124
      %p126 = scmp.ne.s32.totalorder %s112, %s113
      %p127 = scmp.eq.s32.totalorder %s41, 3
      %p128 = por %p126, %p127
      %p130 = scmp.ne.s32.totalorder %s113, %s129
      %p131 = scmp.eq.s32.totalorder %s41, 0
      %p132 = por %p130, %p131
      %s133 = ssub.s32 %s43, %s50
      %p134 = scmp.eq.s32.totalorder %s133, 0
      %s136 = sadd.s32 %s135, 1
      %s137 = scalar_select %p134, %s135, %s136
      %p140 = pneg %p134
      %p141 = scmp.eq.s32.totalorder %s35, 3
      %p142 = por %p140, %p141
      %p143 = scmp.ne.s32.totalorder %s135, %s138
      %p144 = scmp.eq.s32.totalorder %s35, 0
      %p145 = por %p143, %p144
      %p146 = scmp.ne.s32.totalorder %s135, %s138
      %p147 = scmp.eq.s32.totalorder %s40, 3
      %p148 = por %p146, %p147
      %p149 = scmp.ne.s32.totalorder %s138, %s139
      %p150 = scmp.eq.s32.totalorder %s40, 0
      %p151 = por %p149, %p150
      %p152 = scmp.ne.s32.totalorder %s138, %s139
      %p153 = scmp.eq.s32.totalorder %s41, 3
      %p154 = por %p152, %p153
      %p156 = scmp.ne.s32.totalorder %s139, %s155
      %p157 = scmp.eq.s32.totalorder %s41, 0
      %p158 = por %p156, %p157
      %s159 = ssub.s32 %s43, %s50
      %p160 = scmp.eq.s32.totalorder %s159, 0
      %s162 = sadd.s32 %s161, 1
      %s163 = scalar_select %p160, %s161, %s162
      %p166 = pneg %p160
      %p167 = scmp.eq.s32.totalorder %s35, 3
      %p168 = por %p166, %p167
      %p169 = scmp.ne.s32.totalorder %s161, %s164
      %p170 = scmp.eq.s32.totalorder %s35, 0
      %p171 = por %p169, %p170
      %p172 = scmp.ne.s32.totalorder %s161, %s164
      %p173 = scmp.eq.s32.totalorder %s40, 3
      %p174 = por %p172, %p173
      %p175 = scmp.ne.s32.totalorder %s164, %s165
      %p176 = scmp.eq.s32.totalorder %s40, 0
      %p177 = por %p175, %p176
      %p178 = scmp.ne.s32.totalorder %s164, %s165
      %p179 = scmp.eq.s32.totalorder %s41, 3
      %p180 = por %p178, %p179
      %p182 = scmp.ne.s32.totalorder %s165, %s181
      %p183 = scmp.eq.s32.totalorder %s41, 0
      %p184 = por %p182, %p183
      %s185 = ssub.s32 %s43, %s50
      %p186 = scmp.eq.s32.totalorder %s185, 0
      %s188 = sadd.s32 %s187, 1
      %s189 = scalar_select %p186, %s187, %s188
      %p192 = pneg %p186
      %p193 = scmp.eq.s32.totalorder %s35, 3
      %p194 = por %p192, %p193
      %p195 = scmp.ne.s32.totalorder %s187, %s190
      %p196 = scmp.eq.s32.totalorder %s35, 0
      %p197 = por %p195, %p196
      %p198 = scmp.ne.s32.totalorder %s187, %s190
      %p199 = scmp.eq.s32.totalorder %s40, 3
      %p200 = por %p198, %p199
      %p201 = scmp.ne.s32.totalorder %s190, %s191
      %p202 = scmp.eq.s32.totalorder %s40, 0
      %p203 = por %p201, %p202
      %p204 = scmp.ne.s32.totalorder %s190, %s191
      %p205 = scmp.eq.s32.totalorder %s41, 3
      %p206 = por %p204, %p205
      %p208 = scmp.ne.s32.totalorder %s191, %s207
      %p209 = scmp.eq.s32.totalorder %s41, 0
      %p210 = por %p208, %p209
      %s211 = ssub.s32 %s43, %s50
      %p212 = scmp.eq.s32.totalorder %s211, 0
      %s214 = sadd.s32 %s213, 1
      %s215 = scalar_select %p212, %s213, %s214
      %p218 = pneg %p212
      %p219 = scmp.eq.s32.totalorder %s35, 3
      %p220 = por %p218, %p219
      %p221 = scmp.ne.s32.totalorder %s213, %s216
      %p222 = scmp.eq.s32.totalorder %s35, 0
      %p223 = por %p221, %p222
      %p224 = scmp.ne.s32.totalorder %s213, %s216
      %p225 = scmp.eq.s32.totalorder %s40, 3
      %p226 = por %p224, %p225
      %p227 = scmp.ne.s32.totalorder %s216, %s217
      %p228 = scmp.eq.s32.totalorder %s40, 0
      %p229 = por %p227, %p228
      %p230 = scmp.ne.s32.totalorder %s216, %s217
      %p231 = scmp.eq.s32.totalorder %s41, 3
      %p232 = por %p230, %p231
      %p234 = scmp.ne.s32.totalorder %s217, %s233
      %p235 = scmp.eq.s32.totalorder %s41, 0
      %p236 = por %p234, %p235
      %s237 = ssub.s32 %s43, %s50
      %p238 = scmp.eq.s32.totalorder %s237, 0
      %s240 = sadd.s32 %s239, 1
      %s241 = scalar_select %p238, %s239, %s240
      %p244 = pneg %p238
      %p245 = scmp.eq.s32.totalorder %s35, 3
      %p246 = por %p244, %p245
      %p247 = scmp.ne.s32.totalorder %s239, %s242
      %p248 = scmp.eq.s32.totalorder %s35, 0
      %p249 = por %p247, %p248
      %p250 = scmp.ne.s32.totalorder %s239, %s242
      %p251 = scmp.eq.s32.totalorder %s40, 3
      %p252 = por %p250, %p251
      %p253 = scmp.ne.s32.totalorder %s242, %s243
      %p254 = scmp.eq.s32.totalorder %s40, 0
      %p255 = por %p253, %p254
      %p256 = scmp.ne.s32.totalorder %s242, %s243
      %p257 = scmp.eq.s32.totalorder %s41, 3
      %p258 = por %p256, %p257
      %p260 = scmp.ne.s32.totalorder %s243, %s259
      %p261 = scmp.eq.s32.totalorder %s41, 0
      %p262 = por %p260, %p261
      %s263 = ssub.s32 %s43, %s50
      %p264 = scmp.eq.s32.totalorder %s263, 0
      %s266 = sadd.s32 %s265, 1
      %s267 = scalar_select %p264, %s265, %s266
      %p270 = pneg %p264
      %p271 = scmp.eq.s32.totalorder %s35, 3
      %p272 = por %p270, %p271
      %p273 = scmp.ne.s32.totalorder %s265, %s268
      %p274 = scmp.eq.s32.totalorder %s35, 0
      %p275 = por %p273, %p274
      %p276 = scmp.ne.s32.totalorder %s265, %s268
      %p277 = scmp.eq.s32.totalorder %s40, 3
      %p278 = por %p276, %p277
      %p279 = scmp.ne.s32.totalorder %s268, %s269
      %p280 = scmp.eq.s32.totalorder %s40, 0
      %p281 = por %p279, %p280
      %p282 = scmp.ne.s32.totalorder %s268, %s269
      %p283 = scmp.eq.s32.totalorder %s41, 3
      %p284 = por %p282, %p283
      %p286 = scmp.ne.s32.totalorder %s269, %s285
      %p287 = scmp.eq.s32.totalorder %s41, 0
      %p288 = por %p286, %p287
      %s289 = ssub.s32 %s43, %s50
      %p290 = scmp.eq.s32.totalorder %s289, 0
      %s292 = sadd.s32 %s291, 1
      %s293 = scalar_select %p290, %s291, %s292
      %p296 = pneg %p290
      %p297 = scmp.eq.s32.totalorder %s35, 3
      %p298 = por %p296, %p297
      %p299 = scmp.ne.s32.totalorder %s291, %s294
      %p300 = scmp.eq.s32.totalorder %s35, 0
      %p301 = por %p299, %p300
      %p302 = scmp.ne.s32.totalorder %s291, %s294
      %p303 = scmp.eq.s32.totalorder %s40, 3
      %p304 = por %p302, %p303
      %p305 = scmp.ne.s32.totalorder %s294, %s295
      %p306 = scmp.eq.s32.totalorder %s40, 0
      %p307 = por %p305, %p306
      %p308 = scmp.ne.s32.totalorder %s294, %s295
      %p309 = scmp.eq.s32.totalorder %s41, 3
      %p310 = por %p308, %p309
      %p312 = scmp.ne.s32.totalorder %s295, %s311
      %p313 = scmp.eq.s32.totalorder %s41, 0
      %p314 = por %p312, %p313
      %s315 = ssub.s32 %s43, %s50
      %p316 = scmp.eq.s32.totalorder %s315, 0
      %s318 = sadd.s32 %s317, 1
      %s319 = scalar_select %p316, %s317, %s318
      %p322 = pneg %p316
      %p323 = scmp.eq.s32.totalorder %s35, 3
      %p324 = por %p322, %p323
      %p325 = scmp.ne.s32.totalorder %s317, %s320
      %p326 = scmp.eq.s32.totalorder %s35, 0
      %p327 = por %p325, %p326
      %p328 = scmp.ne.s32.totalorder %s317, %s320
      %p329 = scmp.eq.s32.totalorder %s40, 3
      %p330 = por %p328, %p329
      %p331 = scmp.ne.s32.totalorder %s320, %s321
      %p332 = scmp.eq.s32.totalorder %s40, 0
      %p333 = por %p331, %p332
      %p334 = scmp.ne.s32.totalorder %s320, %s321
      %p335 = scmp.eq.s32.totalorder %s41, 3
      %p336 = por %p334, %p335
      %p338 = scmp.ne.s32.totalorder %s321, %s337
      %p339 = scmp.eq.s32.totalorder %s41, 0
      %p340 = por %p338, %p339
      %s341 = ssub.s32 %s43, %s50
      %p342 = scmp.eq.s32.totalorder %s341, 0
      %s344 = sadd.s32 %s343, 1
      %s345 = scalar_select %p342, %s343, %s344
      %p348 = pneg %p342
      %p349 = scmp.eq.s32.totalorder %s35, 3
      %p350 = por %p348, %p349
      %p351 = scmp.ne.s32.totalorder %s343, %s346
      %p352 = scmp.eq.s32.totalorder %s35, 0
      %p353 = por %p351, %p352
      %p354 = scmp.ne.s32.totalorder %s343, %s346
      %p355 = scmp.eq.s32.totalorder %s40, 3
      %p356 = por %p354, %p355
      %p357 = scmp.ne.s32.totalorder %s346, %s347
      %p358 = scmp.eq.s32.totalorder %s40, 0
      %p359 = por %p357, %p358
      %p360 = scmp.ne.s32.totalorder %s346, %s347
      %p361 = scmp.eq.s32.totalorder %s41, 3
      %p362 = por %p360, %p361
      %p364 = scmp.ne.s32.totalorder %s347, %s363
      %p365 = scmp.eq.s32.totalorder %s41, 0
      %p366 = por %p364, %p365
      %s368 = sadd.s32 %s367, 1
      %p371 = scmp.eq.s32.totalorder %s35, 3
      %p372 = scmp.ne.s32.totalorder %s367, %s369
      %p373 = scmp.eq.s32.totalorder %s35, 0
      %p374 = por %p372, %p373
      %p375 = scmp.ne.s32.totalorder %s367, %s369
      %p376 = scmp.eq.s32.totalorder %s40, 3
      %p377 = por %p375, %p376
      %p378 = scmp.ne.s32.totalorder %s369, %s370
      %p379 = scmp.eq.s32.totalorder %s40, 0
      %p380 = por %p378, %p379
      %p381 = scmp.ne.s32.totalorder %s369, %s370
      %p382 = scmp.eq.s32.totalorder %s41, 3
      %p383 = por %p381, %p382
      %p385 = scmp.ne.s32.totalorder %s370, %s384
      %p386 = scmp.eq.s32.totalorder %s41, 0
      %p387 = por %p385, %p386
      %s389 = sadd.s32 %s388, 1
      %p392 = scmp.eq.s32.totalorder %s35, 3
      %p393 = scmp.ne.s32.totalorder %s388, %s390
      %p394 = scmp.eq.s32.totalorder %s35, 0
      %p395 = por %p393, %p394
      %p396 = scmp.ne.s32.totalorder %s388, %s390
      %p397 = scmp.eq.s32.totalorder %s40, 3
      %p398 = por %p396, %p397
      %p399 = scmp.ne.s32.totalorder %s390, %s391
      %p400 = scmp.eq.s32.totalorder %s40, 0
      %p401 = por %p399, %p400
      %p402 = scmp.ne.s32.totalorder %s390, %s391
      %p403 = scmp.eq.s32.totalorder %s41, 3
      %p404 = por %p402, %p403
      %p406 = scmp.ne.s32.totalorder %s391, %s405
      %p407 = scmp.eq.s32.totalorder %s41, 0
      %p408 = por %p406, %p407
      %s409 = ssub.s32 %s42, %s54
      %p410 = scmp.eq.s32.totalorder %s409, 0
      %s412 = sadd.s32 %s411, 1
      %s413 = scalar_select %p410, %s411, %s412
      %p416 = pneg %p410
      %p417 = scmp.eq.s32.totalorder %s35, 3
      %p418 = por %p416, %p417
      %p419 = scmp.ne.s32.totalorder %s411, %s414
      %p420 = scmp.eq.s32.totalorder %s35, 0
      %p421 = por %p419, %p420
      %p422 = scmp.ne.s32.totalorder %s411, %s414
      %p423 = scmp.eq.s32.totalorder %s40, 3
      %p424 = por %p422, %p423
      %p425 = scmp.ne.s32.totalorder %s414, %s415
      %p426 = scmp.eq.s32.totalorder %s40, 0
      %p427 = por %p425, %p426
      %p428 = scmp.ne.s32.totalorder %s414, %s415
      %p429 = scmp.eq.s32.totalorder %s41, 3
      %p430 = por %p428, %p429
      %p432 = scmp.ne.s32.totalorder %s415, %s431
      %p433 = scmp.eq.s32.totalorder %s41, 0
      %p434 = por %p432, %p433
      %p435 = scmp.le.s32.totalorder 1, %s35
      %p436 = scmp.lt.s32.totalorder %s35, 5
      %p437 = pnand %p435, %p436
      %p438 = pneg %p437
      // Predicated region
      $region9: #{tpu_custom_call.1} parent=5 // pred_check
        _
      $region10: #{tpu_custom_call.1} parent=5 // pred_check_branch
        %440 = sbr.rel (%p437) target = $region12
      $region11: #{tpu_custom_call.1} parent=5 // pred_region
        %s441 = ssub.s32 %s35, 1
        // Predicated region
        $region13: #{tpu_custom_call.1} parent=11 // pred_check
          %p442 = pneg %p380
        $region14: #{tpu_custom_call.1} parent=11 // pred_check_branch
          %444 = sbr.rel (%p442) target = $region16
        $region15: #{tpu_custom_call.1} parent=11 // pred_region
          _
        $region16: #{tpu_custom_call.1} parent=11 // pred_fallthru
          _
        // Predicated region
        $region17: #{tpu_custom_call.1} parent=11 // pred_check
          %p445 = pneg %p401
        $region18: #{tpu_custom_call.1} parent=11 // pred_check_branch
          %447 = sbr.rel (%p445) target = $region20
        $region19: #{tpu_custom_call.1} parent=11 // pred_region
          _
        $region20: #{tpu_custom_call.1} parent=11 // pred_fallthru
          _
      $region12: #{tpu_custom_call.1} parent=5 // pred_fallthru
        _
      %p448 = scmp.lt.s32.totalorder %s35, 4
      // Predicated region
      $region21: #{tpu_custom_call.1} parent=5 // pred_check
        %p449 = pneg %p448
      $region22: #{tpu_custom_call.1} parent=5 // pred_check_branch
        %451 = sbr.rel (%p449) target = $region24
      $region23: #{tpu_custom_call.1} parent=5 // pred_region
        // Predicated region
        $region25: #{tpu_custom_call.1} parent=23 // pred_check
          %p452 = pneg %p67
        $region26: #{tpu_custom_call.1} parent=23 // pred_check_branch
          %454 = sbr.rel (%p452) target = $region28
        $region27: #{tpu_custom_call.1} parent=23 // pred_region
          %s455 = sand.u32 %s57, 1
          %s456 = scalar_lea.sflag [#allocation4], %s455
          %s457 = sand.u32 %s57, 1
          %s458 = smul.addr %s457, 8
          %s459 = scalar_lea.vmem [#allocation3], %s458
          %461 = vsyncadd %s456, 0
          %s462 = smul.addr %s42, 8
          %s463 = scalar_lea.hbm %s0, %s462
          %s465 = sshll.u32 %s463, 4
          %s466 = int_to_ptr.hbm [resolvable:$true] %s465
          %s467 = sshll.u32 %s459, 4
          %s468 = int_to_ptr.vmem [resolvable:$true] %s467
          %470 = dma.hbm_to_vmem [thread:$0]  %s466, 128, %s468, %s456
        $region28: #{tpu_custom_call.1} parent=23 // pred_fallthru
          _
        // Predicated region
        $region29: #{tpu_custom_call.1} parent=23 // pred_check
          %p471 = pneg %p93
        $region30: #{tpu_custom_call.1} parent=23 // pred_check_branch
          %473 = sbr.rel (%p471) target = $region32
        $region31: #{tpu_custom_call.1} parent=23 // pred_region
          %s474 = sand.u32 %s35, 1
          %s475 = scalar_lea.sflag [#allocation7], %s474
          %s476 = sand.u32 %s83, 1
          %s477 = scalar_lea.vmem [#allocation6], %s476
          %479 = vsyncadd %s475, 0
          %s480 = scalar_lea.hbm %s1, %s43
          %s482 = sshll.u32 %s480, 4
          %s483 = int_to_ptr.hbm [resolvable:$true] %s482
          %s484 = sshll.u32 %s477, 4
          %s485 = int_to_ptr.vmem [resolvable:$true] %s484
          %487 = dma.hbm_to_vmem [thread:$0]  %s483, 16, %s485, %s475
        $region32: #{tpu_custom_call.1} parent=23 // pred_fallthru
          _
        // Predicated region
        $region33: #{tpu_custom_call.1} parent=23 // pred_check
          %p488 = pneg %p119
        $region34: #{tpu_custom_call.1} parent=23 // pred_check_branch
          %490 = sbr.rel (%p488) target = $region36
        $region35: #{tpu_custom_call.1} parent=23 // pred_region
          %s491 = sand.u32 %s35, 1
          %s492 = scalar_lea.sflag [#allocation7], %s491
          %s493 = sand.u32 %s109, 1
          %s494 = scalar_lea.vmem [#allocation8], %s493
          %496 = vsyncadd %s492, 0
          %s497 = scalar_lea.hbm %s2, %s43
          %s499 = sshll.u32 %s497, 4
          %s500 = int_to_ptr.hbm [resolvable:$true] %s499
          %s501 = sshll.u32 %s494, 4
          %s502 = int_to_ptr.vmem [resolvable:$true] %s501
          %504 = dma.hbm_to_vmem [thread:$0]  %s500, 16, %s502, %s492
        $region36: #{tpu_custom_call.1} parent=23 // pred_fallthru
          _
        // Predicated region
        $region37: #{tpu_custom_call.1} parent=23 // pred_check
          %p505 = pneg %p145
        $region38: #{tpu_custom_call.1} parent=23 // pred_check_branch
          %507 = sbr.rel (%p505) target = $region40
        $region39: #{tpu_custom_call.1} parent=23 // pred_region
          %s508 = sand.u32 %s35, 1
          %s509 = scalar_lea.sflag [#allocation10], %s508
          %s510 = sand.u32 %s135, 1
          %s511 = smul.addr %s510, 768
          %s512 = scalar_lea.vmem [#allocation9], %s511
          %514 = vsyncadd %s509, 0
          %s515 = smul.addr %s43, 192
          %s516 = smul.addr %s515, 4
          %s517 = scalar_lea.hbm %s3, %s516
          %s518 = sshll.u32 %s517, 4
          %s519 = int_to_ptr.hbm [resolvable:$true] %s518
          %s520 = sshll.u32 %s512, 4
          %s521 = int_to_ptr.vmem [resolvable:$true] %s520
          %526 = dma.hbm_to_vmem [thread:$0]  %s519, 12288, %s521, %s509, 768, 768, 48
        $region40: #{tpu_custom_call.1} parent=23 // pred_fallthru
          _
        // Predicated region
        $region41: #{tpu_custom_call.1} parent=23 // pred_check
          %p527 = pneg %p171
        $region42: #{tpu_custom_call.1} parent=23 // pred_check_branch
          %529 = sbr.rel (%p527) target = $region44
        $region43: #{tpu_custom_call.1} parent=23 // pred_region
          %s530 = sand.u32 %s35, 1
          %s531 = scalar_lea.sflag [#allocation10], %s530
          %s532 = sand.u32 %s161, 1
          %s533 = smul.addr %s532, 256
          %s534 = scalar_lea.vmem [#allocation11], %s533
          %536 = vsyncadd %s531, 0
          %s537 = smul.addr %s43, 64
          %s538 = smul.addr %s537, 4
          %s539 = scalar_lea.hbm %s4, %s538
          %s540 = sshll.u32 %s539, 4
          %s541 = int_to_ptr.hbm [resolvable:$true] %s540
          %s542 = sshll.u32 %s534, 4
          %s543 = int_to_ptr.vmem [resolvable:$true] %s542
          %548 = dma.hbm_to_vmem [thread:$0]  %s541, 4096, %s543, %s531, 64, 64, 4
        $region44: #{tpu_custom_call.1} parent=23 // pred_fallthru
          _
        // Predicated region
        $region45: #{tpu_custom_call.1} parent=23 // pred_check
          %p549 = pneg %p197
        $region46: #{tpu_custom_call.1} parent=23 // pred_check_branch
          %551 = sbr.rel (%p549) target = $region48
        $region47: #{tpu_custom_call.1} parent=23 // pred_region
          %p552 = scmp.lt.s32.totalorder %s43, 1
          %s553 = scalar_select %p552, %s43, 1
          %s554 = scalar_lea.vmem %s5, %s553
        $region48: #{tpu_custom_call.1} parent=23 // pred_fallthru
          _
        // Predicated region
        $region49: #{tpu_custom_call.1} parent=23 // pred_check
          %p555 = pneg %p223
        $region50: #{tpu_custom_call.1} parent=23 // pred_check_branch
          %557 = sbr.rel (%p555) target = $region52
        $region51: #{tpu_custom_call.1} parent=23 // pred_region
          %p558 = scmp.lt.s32.totalorder %s43, 1
          %s559 = scalar_select %p558, %s43, 1
          %s560 = scalar_lea.vmem %s6, %s559
        $region52: #{tpu_custom_call.1} parent=23 // pred_fallthru
          _
        // Predicated region
        $region53: #{tpu_custom_call.1} parent=23 // pred_check
          %p561 = pneg %p249
        $region54: #{tpu_custom_call.1} parent=23 // pred_check_branch
          %563 = sbr.rel (%p561) target = $region56
        $region55: #{tpu_custom_call.1} parent=23 // pred_region
          %p564 = scmp.lt.s32.totalorder %s43, 1
          %s565 = scalar_select %p564, %s43, 1
          %s566 = scalar_lea.vmem %s7, %s565
        $region56: #{tpu_custom_call.1} parent=23 // pred_fallthru
          _
        // Predicated region
        $region57: #{tpu_custom_call.1} parent=23 // pred_check
          %p567 = pneg %p275
        $region58: #{tpu_custom_call.1} parent=23 // pred_check_branch
          %569 = sbr.rel (%p567) target = $region60
        $region59: #{tpu_custom_call.1} parent=23 // pred_region
          %s570 = sand.u32 %s35, 1
          %s571 = scalar_lea.sflag [#allocation13], %s570
          %s572 = sand.u32 %s265, 1
          %s573 = smul.addr %s572, 64
          %s574 = scalar_lea.vmem [#allocation12], %s573
          %576 = vsyncadd %s571, 0
          %s577 = smul.addr %s43, 16
          %s578 = smul.addr %s577, 4
          %s579 = scalar_lea.hbm %s8, %s578
          %s580 = sshll.u32 %s579, 4
          %s581 = int_to_ptr.hbm [resolvable:$true] %s580
          %s582 = sshll.u32 %s574, 4
          %s583 = int_to_ptr.vmem [resolvable:$true] %s582
          %588 = dma.hbm_to_vmem [thread:$0]  %s581, 1024, %s583, %s571, 64, 64, 4
        $region60: #{tpu_custom_call.1} parent=23 // pred_fallthru
          _
        // Predicated region
        $region61: #{tpu_custom_call.1} parent=23 // pred_check
          %p589 = pneg %p301
        $region62: #{tpu_custom_call.1} parent=23 // pred_check_branch
          %591 = sbr.rel (%p589) target = $region64
        $region63: #{tpu_custom_call.1} parent=23 // pred_region
          %p592 = scmp.lt.s32.totalorder %s43, 1
          %s593 = scalar_select %p592, %s43, 1
          %s594 = scalar_lea.vmem %s9, %s593
        $region64: #{tpu_custom_call.1} parent=23 // pred_fallthru
          _
        // Predicated region
        $region65: #{tpu_custom_call.1} parent=23 // pred_check
          %p595 = pneg %p327
        $region66: #{tpu_custom_call.1} parent=23 // pred_check_branch
          %597 = sbr.rel (%p595) target = $region68
        $region67: #{tpu_custom_call.1} parent=23 // pred_region
          %s598 = sand.u32 %s35, 1
          %s599 = scalar_lea.sflag [#allocation13], %s598
          %s600 = sand.u32 %s317, 1
          %s601 = smul.addr %s600, 64
          %s602 = scalar_lea.vmem [#allocation14], %s601
          %604 = vsyncadd %s599, 0
          %s605 = smul.addr %s43, 16
          %s606 = smul.addr %s605, 4
          %s607 = scalar_lea.hbm %s10, %s606
          %s608 = sshll.u32 %s607, 4
          %s609 = int_to_ptr.hbm [resolvable:$true] %s608
          %s610 = sshll.u32 %s602, 4
          %s611 = int_to_ptr.vmem [resolvable:$true] %s610
          %616 = dma.hbm_to_vmem [thread:$0]  %s609, 1024, %s611, %s599, 64, 64, 4
        $region68: #{tpu_custom_call.1} parent=23 // pred_fallthru
          _
        // Predicated region
        $region69: #{tpu_custom_call.1} parent=23 // pred_check
          %p617 = pneg %p353
        $region70: #{tpu_custom_call.1} parent=23 // pred_check_branch
          %619 = sbr.rel (%p617) target = $region72
        $region71: #{tpu_custom_call.1} parent=23 // pred_region
          %p620 = scmp.lt.s32.totalorder %s43, 1
          %s621 = scalar_select %p620, %s43, 1
          %s622 = scalar_lea.vmem %s11, %s621
        $region72: #{tpu_custom_call.1} parent=23 // pred_fallthru
          _
      $region24: #{tpu_custom_call.1} parent=5 // pred_fallthru
        _
      %p623 = scmp.le.s32.totalorder 1, %s35
      %p624 = scmp.lt.s32.totalorder %s35, 5
      %p625 = pnand %p623, %p624
      %p626 = pneg %p625
      // Predicated region
      $region73: #{tpu_custom_call.1} parent=5 // pred_check
        _
      $region74: #{tpu_custom_call.1} parent=5 // pred_check_branch
        %628 = sbr.rel (%p625) target = $region76
      $region75: #{tpu_custom_call.1} parent=5 // pred_region
        %s629 = ssub.s32 %s35, 1
        %s630 = sand.u32 %s60, 1
        %s631 = scalar_lea.sflag [#allocation4], %s630
        %s632 = sand.u32 %s60, 1
        %s633 = smul.addr %s632, 8
        %s634 = scalar_lea.vmem [#allocation3], %s633
        // Predicated region
        $region77: #{tpu_custom_call.1} parent=75 // pred_check
          %p635 = pneg %p73
        $region78: #{tpu_custom_call.1} parent=75 // pred_check_branch
          %637 = sbr.rel (%p635) target = $region80
        $region79: #{tpu_custom_call.1} parent=75 // pred_region
          %639 = dma.done %s631, 128
        $region80: #{tpu_custom_call.1} parent=75 // pred_fallthru
          _
        %s640 = sand.u32 %s40, 1
        %s641 = scalar_lea.sflag [#allocation7], %s640
        %s642 = sand.u32 %s86, 1
        %s643 = scalar_lea.vmem [#allocation6], %s642
        // Predicated region
        $region81: #{tpu_custom_call.1} parent=75 // pred_check
          %p644 = pneg %p99
        $region82: #{tpu_custom_call.1} parent=75 // pred_check_branch
          %646 = sbr.rel (%p644) target = $region84
        $region83: #{tpu_custom_call.1} parent=75 // pred_region
          %648 = dma.done %s641, 16
        $region84: #{tpu_custom_call.1} parent=75 // pred_fallthru
          _
        %s649 = sand.u32 %s40, 1
        %s650 = scalar_lea.sflag [#allocation7], %s649
        %s651 = sand.u32 %s112, 1
        %s652 = scalar_lea.vmem [#allocation8], %s651
        // Predicated region
        $region85: #{tpu_custom_call.1} parent=75 // pred_check
          %p653 = pneg %p125
        $region86: #{tpu_custom_call.1} parent=75 // pred_check_branch
          %655 = sbr.rel (%p653) target = $region88
        $region87: #{tpu_custom_call.1} parent=75 // pred_region
          %657 = dma.done %s650, 16
        $region88: #{tpu_custom_call.1} parent=75 // pred_fallthru
          _
        %s658 = sand.u32 %s40, 1
        %s659 = scalar_lea.sflag [#allocation10], %s658
        %s660 = sand.u32 %s138, 1
        %s661 = smul.addr %s660, 768
        %s662 = scalar_lea.vmem [#allocation9], %s661
        // Predicated region
        $region89: #{tpu_custom_call.1} parent=75 // pred_check
          %p663 = pneg %p151
        $region90: #{tpu_custom_call.1} parent=75 // pred_check_branch
          %665 = sbr.rel (%p663) target = $region92
        $region91: #{tpu_custom_call.1} parent=75 // pred_region
          %667 = dma.done %s659, 12288
        $region92: #{tpu_custom_call.1} parent=75 // pred_fallthru
          _
        %s668 = sand.u32 %s40, 1
        %s669 = scalar_lea.sflag [#allocation10], %s668
        %s670 = sand.u32 %s164, 1
        %s671 = smul.addr %s670, 256
        %s672 = scalar_lea.vmem [#allocation11], %s671
        // Predicated region
        $region93: #{tpu_custom_call.1} parent=75 // pred_check
          %p673 = pneg %p177
        $region94: #{tpu_custom_call.1} parent=75 // pred_check_branch
          %675 = sbr.rel (%p673) target = $region96
        $region95: #{tpu_custom_call.1} parent=75 // pred_region
          %677 = dma.done %s669, 4096
        $region96: #{tpu_custom_call.1} parent=75 // pred_fallthru
          _
        %s678 = sand.u32 %s40, 1
        %s679 = scalar_lea.sflag [#allocation13], %s678
        %s680 = sand.u32 %s268, 1
        %s681 = smul.addr %s680, 64
        %s682 = scalar_lea.vmem [#allocation12], %s681
        // Predicated region
        $region97: #{tpu_custom_call.1} parent=75 // pred_check
          %p683 = pneg %p281
        $region98: #{tpu_custom_call.1} parent=75 // pred_check_branch
          %685 = sbr.rel (%p683) target = $region100
        $region99: #{tpu_custom_call.1} parent=75 // pred_region
          %687 = dma.done %s679, 1024
        $region100: #{tpu_custom_call.1} parent=75 // pred_fallthru
          _
        %s688 = sand.u32 %s40, 1
        %s689 = scalar_lea.sflag [#allocation13], %s688
        %s690 = sand.u32 %s320, 1
        %s691 = smul.addr %s690, 64
        %s692 = scalar_lea.vmem [#allocation14], %s691
        // Predicated region
        $region101: #{tpu_custom_call.1} parent=75 // pred_check
          %p693 = pneg %p333
        $region102: #{tpu_custom_call.1} parent=75 // pred_check_branch
          %695 = sbr.rel (%p693) target = $region104
        $region103: #{tpu_custom_call.1} parent=75 // pred_region
          %697 = dma.done %s689, 1024
        $region104: #{tpu_custom_call.1} parent=75 // pred_fallthru
          _
        %s698 = sand.u32 %s60, 1
        %s699 = scalar_lea.sflag [#allocation4], %s698
        %s700 = sand.u32 %s60, 1
        %s701 = smul.addr %s700, 8
        %s702 = scalar_lea.vmem [#allocation3], %s701
        %p703 = pneg %p73
        %p704 = pneg %p70
        %s705 = sand.u32 %s40, 1
        %s706 = scalar_lea.sflag [#allocation7], %s705
        %s707 = sand.u32 %s86, 1
        %s708 = scalar_lea.vmem [#allocation6], %s707
        %p709 = pneg %p99
        %p710 = pneg %p96
        %s711 = sand.u32 %s40, 1
        %s712 = scalar_lea.sflag [#allocation7], %s711
        %s713 = sand.u32 %s112, 1
        %s714 = scalar_lea.vmem [#allocation8], %s713
        %p715 = pneg %p125
        %p716 = pneg %p122
        %s717 = sand.u32 %s40, 1
        %s718 = scalar_lea.sflag [#allocation10], %s717
        %s719 = sand.u32 %s138, 1
        %s720 = smul.addr %s719, 768
        %s721 = scalar_lea.vmem [#allocation9], %s720
        %p722 = pneg %p151
        %p723 = pneg %p148
        %s724 = sand.u32 %s40, 1
        %s725 = scalar_lea.sflag [#allocation10], %s724
        %s726 = sand.u32 %s164, 1
        %s727 = smul.addr %s726, 256
        %s728 = scalar_lea.vmem [#allocation11], %s727
        %p729 = pneg %p177
        %p730 = pneg %p174
        %p731 = scmp.lt.s32.totalorder %s45, 1
        %s732 = scalar_select %p731, %s45, 1
        %s733 = scalar_lea.vmem %s5, %s732
        %p734 = pneg %p203
        %p735 = pneg %p200
        %p736 = scmp.lt.s32.totalorder %s45, 1
        %s737 = scalar_select %p736, %s45, 1
        %s738 = scalar_lea.vmem %s6, %s737
        %p739 = pneg %p229
        %p740 = pneg %p226
        %p741 = scmp.lt.s32.totalorder %s45, 1
        %s742 = scalar_select %p741, %s45, 1
        %s743 = scalar_lea.vmem %s7, %s742
        %p744 = pneg %p255
        %p745 = pneg %p252
        %s746 = sand.u32 %s40, 1
        %s747 = scalar_lea.sflag [#allocation13], %s746
        %s748 = sand.u32 %s268, 1
        %s749 = smul.addr %s748, 64
        %s750 = scalar_lea.vmem [#allocation12], %s749
        %p751 = pneg %p281
        %p752 = pneg %p278
        %p753 = scmp.lt.s32.totalorder %s45, 1
        %s754 = scalar_select %p753, %s45, 1
        %s755 = scalar_lea.vmem %s9, %s754
        %p756 = pneg %p307
        %p757 = pneg %p304
        %s758 = sand.u32 %s40, 1
        %s759 = scalar_lea.sflag [#allocation13], %s758
        %s760 = sand.u32 %s320, 1
        %s761 = smul.addr %s760, 64
        %s762 = scalar_lea.vmem [#allocation14], %s761
        %p763 = pneg %p333
        %p764 = pneg %p330
        %p765 = scmp.lt.s32.totalorder %s45, 1
        %s766 = scalar_select %p765, %s45, 1
        %s767 = scalar_lea.vmem %s11, %s766
        %p768 = pneg %p359
        %p769 = pneg %p356
        %p770 = pneg %p380
        %p771 = pneg %p377
        %p772 = pneg %p401
        %p773 = pneg %p398
        %p774 = pneg %p427
        %p775 = pneg %p424
        %s776 = sand.u32 %s414, 1
        %s777 = scalar_lea.sflag [#allocation5], %s776
        %s778 = sand.u32 %s414, 1
        %s779 = smul.addr %s778, 8
        %s780 = scalar_lea.vmem [#allocation15], %s779
        %p781 = scmp.lt.s32.totalorder %s45, 1
        %s782 = scalar_select %p781, %s45, 1
        %s783 = scalar_lea.vmem %s5, %s782
        %p784 = scmp.lt.s32.totalorder %s45, 1
        %s785 = scalar_select %p784, %s45, 1
        %s786 = scalar_lea.vmem %s6, %s785
        %p787 = scmp.lt.s32.totalorder %s45, 1
        %s788 = scalar_select %p787, %s45, 1
        %s789 = scalar_lea.vmem %s7, %s788
        %p790 = scmp.lt.s32.totalorder %s45, 1
        %s791 = scalar_select %p790, %s45, 1
        %s792 = scalar_lea.vmem %s9, %s791
        %p793 = scmp.lt.s32.totalorder %s45, 1
        %s794 = scalar_select %p793, %s45, 1
        %s795 = scalar_lea.vmem %s11, %s794
        %p797 = scmp.eq.s32.totalorder %s45, 0
        // Predicated region
        $region105: #{tpu_custom_call.1} parent=75 // pred_check
          %p798 = pneg %p797
        $region106: #{tpu_custom_call.1} parent=75 // pred_check_branch
          %800 = sbr.rel (%p798) target = $region108
        $region107: #{tpu_custom_call.1} parent=75 // pred_region
          %v801 = vld [vmem:[%s634] sm:$0xff]
          %802 = vst [vmem:[%s780] sm:$0xff] %v801
        $region108: #{tpu_custom_call.1} parent=75 // pred_fallthru
          _
        %v803 = vld [vmem:[%s780] sm:$0xff]
        %v804 = vlaneseq
        %v805 = vshrl.u32 %v804, 7
        %v806 = vlaneseq
        %v807 = vand.u32 %v806, 127
        %vm808 = vcmp.ge.s32.totalorder %v805, %v807
        %v809 = vsel %vm808, 0.0, -1e+30
        %v810 = vld [vmem:[%s643] sm:$0x1]
        %v811 = vld [vmem:[%s652] sm:$0x1]
        %vm812 = vcmp.lt.s32.totalorder %v807, 32
        %813 = vadd.xlane.f32.xlu0 %v803
        %v814 = vpop.xlane.xlu0 %813
        %v815 = vmul.f32 %v814, 0.03125
        %v816 = vsub.f32 %v803, %v815
        %v817 = vsel %vm812, %v816, 0.0
        %v818 = vmul.f32 %v817, %v817
        %819 = vadd.xlane.f32.xlu0 %v818
        %v820 = vpop.xlane.xlu0 %819
        %v821 = vmul.f32 %v820, 0.03125
        %v822 = vadd.f32 %v821, 1e-05
        %v823 = vrsqrt.pop %v822
        %v824 = vmul.f32 %v823, %v822
        %v825 = vmul.f32 %v824, %v823
        %v826 = vmul.f32 0.5, %v825
        %v827 = vsub.f32 1.5, %v826
        %v828 = vmul.f32 %v823, %v827
        %vm829 = vweird.f32 %v822
        %vm830 = vweird.f32 %v823
        %vm831 = vmor %vm829, %vm830
        %v832 = vsel %vm831, %v823, %v828
        %v833 = vmul.f32 %v817, %v832
        %v835 = vperm.slane %v810, 0
        %v837 = vmul.f32 %v833, %v835
        %v839 = vperm.slane %v811, 0
        %v841 = vadd.f32 %v837, %v839
        %v842 = vpack.c.bf16 %v841, %v841
        %v843 = vld [vmem:[%s662] sm:$0xff]
        %v844 = vld [vmem:[%s662 + $0x8] sm:$0xff]
        %v845 = vld [vmem:[%s662 + $0x10] sm:$0xff]
        %v846 = vld [vmem:[%s662 + $0x18] sm:$0xff]
        %v847 = vld [vmem:[%s662 + $0x20] sm:$0xff]
        %v848 = vld [vmem:[%s662 + $0x28] sm:$0xff]
        %v849 = vld [vmem:[%s662 + $0x30] sm:$0xff]
        %v850 = vld [vmem:[%s662 + $0x38] sm:$0xff]
        %v851 = vld [vmem:[%s662 + $0x40] sm:$0xff]
        %v852 = vld [vmem:[%s662 + $0x48] sm:$0xff]
        %v853 = vld [vmem:[%s662 + $0x50] sm:$0xff]
        %v854 = vld [vmem:[%s662 + $0x58] sm:$0xff]
        %v855 = vld [vmem:[%s662 + $0x60] sm:$0xff]
        %v856 = vld [vmem:[%s662 + $0x68] sm:$0xff]
        %v857 = vld [vmem:[%s662 + $0x70] sm:$0xff]
        %v858 = vld [vmem:[%s662 + $0x78] sm:$0xff]
        %v859 = vld [vmem:[%s662 + $0x80] sm:$0xff]
        %v860 = vld [vmem:[%s662 + $0x88] sm:$0xff]
        %v861 = vld [vmem:[%s662 + $0x90] sm:$0xff]
        %v862 = vld [vmem:[%s662 + $0x98] sm:$0xff]
        %v863 = vld [vmem:[%s662 + $0xa0] sm:$0xff]
        %v864 = vld [vmem:[%s662 + $0xa8] sm:$0xff]
        %v865 = vld [vmem:[%s662 + $0xb0] sm:$0xff]
        %v866 = vld [vmem:[%s662 + $0xb8] sm:$0xff]
        %v867 = vld [vmem:[%s662 + $0xc0] sm:$0xff]
        %v868 = vld [vmem:[%s662 + $0xc8] sm:$0xff]
        %v869 = vld [vmem:[%s662 + $0xd0] sm:$0xff]
        %v870 = vld [vmem:[%s662 + $0xd8] sm:$0xff]
        %v871 = vld [vmem:[%s662 + $0xe0] sm:$0xff]
        %v872 = vld [vmem:[%s662 + $0xe8] sm:$0xff]
        %v873 = vld [vmem:[%s662 + $0xf0] sm:$0xff]
        %v874 = vld [vmem:[%s662 + $0xf8] sm:$0xff]
        %v875 = vld [vmem:[%s662 + $0x100] sm:$0xff]
        %v876 = vld [vmem:[%s662 + $0x108] sm:$0xff]
        %v877 = vld [vmem:[%s662 + $0x110] sm:$0xff]
        %v878 = vld [vmem:[%s662 + $0x118] sm:$0xff]
        %v879 = vld [vmem:[%s662 + $0x120] sm:$0xff]
        %v880 = vld [vmem:[%s662 + $0x128] sm:$0xff]
        %v881 = vld [vmem:[%s662 + $0x130] sm:$0xff]
        %v882 = vld [vmem:[%s662 + $0x138] sm:$0xff]
        %v883 = vld [vmem:[%s662 + $0x140] sm:$0xff]
        %v884 = vld [vmem:[%s662 + $0x148] sm:$0xff]
        %v885 = vld [vmem:[%s662 + $0x150] sm:$0xff]
        %v886 = vld [vmem:[%s662 + $0x158] sm:$0xff]
        %v887 = vld [vmem:[%s662 + $0x160] sm:$0xff]
        %v888 = vld [vmem:[%s662 + $0x168] sm:$0xff]
        %v889 = vld [vmem:[%s662 + $0x170] sm:$0xff]
        %v890 = vld [vmem:[%s662 + $0x178] sm:$0xff]
        %v891 = vld [vmem:[%s662 + $0x180] sm:$0xff]
        %v892 = vld [vmem:[%s662 + $0x188] sm:$0xff]
        %v893 = vld [vmem:[%s662 + $0x190] sm:$0xff]
        %v894 = vld [vmem:[%s662 + $0x198] sm:$0xff]
        %v895 = vld [vmem:[%s662 + $0x1a0] sm:$0xff]
        %v896 = vld [vmem:[%s662 + $0x1a8] sm:$0xff]
        %v897 = vld [vmem:[%s662 + $0x1b0] sm:$0xff]
        %v898 = vld [vmem:[%s662 + $0x1b8] sm:$0xff]
        %v899 = vld [vmem:[%s662 + $0x1c0] sm:$0xff]
        %v900 = vld [vmem:[%s662 + $0x1c8] sm:$0xff]
        %v901 = vld [vmem:[%s662 + $0x1d0] sm:$0xff]
        %v902 = vld [vmem:[%s662 + $0x1d8] sm:$0xff]
        %v903 = vld [vmem:[%s662 + $0x1e0] sm:$0xff]
        %v904 = vld [vmem:[%s662 + $0x1e8] sm:$0xff]
        %v905 = vld [vmem:[%s662 + $0x1f0] sm:$0xff]
        %v906 = vld [vmem:[%s662 + $0x1f8] sm:$0xff]
        %v907 = vld [vmem:[%s662 + $0x200] sm:$0xff]
        %v908 = vld [vmem:[%s662 + $0x208] sm:$0xff]
        %v909 = vld [vmem:[%s662 + $0x210] sm:$0xff]
        %v910 = vld [vmem:[%s662 + $0x218] sm:$0xff]
        %v911 = vld [vmem:[%s662 + $0x220] sm:$0xff]
        %v912 = vld [vmem:[%s662 + $0x228] sm:$0xff]
        %v913 = vld [vmem:[%s662 + $0x230] sm:$0xff]
        %v914 = vld [vmem:[%s662 + $0x238] sm:$0xff]
        %v915 = vld [vmem:[%s662 + $0x240] sm:$0xff]
        %v916 = vld [vmem:[%s662 + $0x248] sm:$0xff]
        %v917 = vld [vmem:[%s662 + $0x250] sm:$0xff]
        %v918 = vld [vmem:[%s662 + $0x258] sm:$0xff]
        %v919 = vld [vmem:[%s662 + $0x260] sm:$0xff]
        %v920 = vld [vmem:[%s662 + $0x268] sm:$0xff]
        %v921 = vld [vmem:[%s662 + $0x270] sm:$0xff]
        %v922 = vld [vmem:[%s662 + $0x278] sm:$0xff]
        %v923 = vld [vmem:[%s662 + $0x280] sm:$0xff]
        %v924 = vld [vmem:[%s662 + $0x288] sm:$0xff]
        %v925 = vld [vmem:[%s662 + $0x290] sm:$0xff]
        %v926 = vld [vmem:[%s662 + $0x298] sm:$0xff]
        %v927 = vld [vmem:[%s662 + $0x2a0] sm:$0xff]
        %v928 = vld [vmem:[%s662 + $0x2a8] sm:$0xff]
        %v929 = vld [vmem:[%s662 + $0x2b0] sm:$0xff]
        %v930 = vld [vmem:[%s662 + $0x2b8] sm:$0xff]
        %v931 = vld [vmem:[%s662 + $0x2c0] sm:$0xff]
        %v932 = vld [vmem:[%s662 + $0x2c8] sm:$0xff]
        %v933 = vld [vmem:[%s662 + $0x2d0] sm:$0xff]
        %v934 = vld [vmem:[%s662 + $0x2d8] sm:$0xff]
        %v935 = vld [vmem:[%s662 + $0x2e0] sm:$0xff]
        %v936 = vld [vmem:[%s662 + $0x2e8] sm:$0xff]
        %v937 = vld [vmem:[%s662 + $0x2f0] sm:$0xff]
        %v938 = vld [vmem:[%s662 + $0x2f8] sm:$0xff]
        %v1035 = vunpack.c.l.b16 %v843
        %v1036 = vunpack.c.h.b16 %v843
        %v1037 = vunpack.c.l.b16 %v844
        %v1038 = vunpack.c.h.b16 %v844
        %v1039 = vunpack.c.l.b16 %v845
        %v1040 = vunpack.c.h.b16 %v845
        %v1041 = vunpack.c.l.b16 %v846
        %v1042 = vunpack.c.h.b16 %v846
        %v1043 = vunpack.c.l.b16 %v847
        %v1044 = vunpack.c.h.b16 %v847
        %v1045 = vunpack.c.l.b16 %v848
        %v1046 = vunpack.c.h.b16 %v848
        %v1047 = vunpack.c.l.b16 %v849
        %v1048 = vunpack.c.h.b16 %v849
        %v1049 = vunpack.c.l.b16 %v850
        %v1050 = vunpack.c.h.b16 %v850
        %v1051 = vunpack.c.l.b16 %v851
        %v1052 = vunpack.c.h.b16 %v851
        %v1053 = vunpack.c.l.b16 %v852
        %v1054 = vunpack.c.h.b16 %v852
        %v1055 = vunpack.c.l.b16 %v853
        %v1056 = vunpack.c.h.b16 %v853
        %v1057 = vunpack.c.l.b16 %v854
        %v1058 = vunpack.c.h.b16 %v854
        %v1059 = vunpack.c.l.b16 %v855
        %v1060 = vunpack.c.h.b16 %v855
        %v1061 = vunpack.c.l.b16 %v856
        %v1062 = vunpack.c.h.b16 %v856
        %v1063 = vunpack.c.l.b16 %v857
        %v1064 = vunpack.c.h.b16 %v857
        %v1065 = vunpack.c.l.b16 %v858
        %v1066 = vunpack.c.h.b16 %v858
        %v1067 = vunpack.c.l.b16 %v859
        %v1068 = vunpack.c.h.b16 %v859
        %v1069 = vunpack.c.l.b16 %v860
        %v1070 = vunpack.c.h.b16 %v860
        %v1071 = vunpack.c.l.b16 %v861
        %v1072 = vunpack.c.h.b16 %v861
        %v1073 = vunpack.c.l.b16 %v862
        %v1074 = vunpack.c.h.b16 %v862
        %v1075 = vunpack.c.l.b16 %v863
        %v1076 = vunpack.c.h.b16 %v863
        %v1077 = vunpack.c.l.b16 %v864
        %v1078 = vunpack.c.h.b16 %v864
        %v1079 = vunpack.c.l.b16 %v865
        %v1080 = vunpack.c.h.b16 %v865
        %v1081 = vunpack.c.l.b16 %v866
        %v1082 = vunpack.c.h.b16 %v866
        %v1083 = vunpack.c.l.b16 %v867
        %v1084 = vunpack.c.h.b16 %v867
        %v1085 = vunpack.c.l.b16 %v868
        %v1086 = vunpack.c.h.b16 %v868
        %v1087 = vunpack.c.l.b16 %v869
        %v1088 = vunpack.c.h.b16 %v869
        %v1089 = vunpack.c.l.b16 %v870
        %v1090 = vunpack.c.h.b16 %v870
        %v1091 = vunpack.c.l.b16 %v871
        %v1092 = vunpack.c.h.b16 %v871
        %v1093 = vunpack.c.l.b16 %v872
        %v1094 = vunpack.c.h.b16 %v872
        %v1095 = vunpack.c.l.b16 %v873
        %v1096 = vunpack.c.h.b16 %v873
        %v1097 = vunpack.c.l.b16 %v874
        %v1098 = vunpack.c.h.b16 %v874
        %v1099 = vunpack.c.l.b16 %v875
        %v1100 = vunpack.c.h.b16 %v875
        %v1101 = vunpack.c.l.b16 %v876
        %v1102 = vunpack.c.h.b16 %v876
        %v1103 = vunpack.c.l.b16 %v877
        %v1104 = vunpack.c.h.b16 %v877
        %v1105 = vunpack.c.l.b16 %v878
        %v1106 = vunpack.c.h.b16 %v878
        %v1107 = vunpack.c.l.b16 %v879
        %v1108 = vunpack.c.h.b16 %v879
        %v1109 = vunpack.c.l.b16 %v880
        %v1110 = vunpack.c.h.b16 %v880
        %v1111 = vunpack.c.l.b16 %v881
        %v1112 = vunpack.c.h.b16 %v881
        %v1113 = vunpack.c.l.b16 %v882
        %v1114 = vunpack.c.h.b16 %v882
        %v1115 = vunpack.c.l.b16 %v883
        %v1116 = vunpack.c.h.b16 %v883
        %v1117 = vunpack.c.l.b16 %v884
        %v1118 = vunpack.c.h.b16 %v884
        %v1119 = vunpack.c.l.b16 %v885
        %v1120 = vunpack.c.h.b16 %v885
        %v1121 = vunpack.c.l.b16 %v886
        %v1122 = vunpack.c.h.b16 %v886
        %v1123 = vunpack.c.l.b16 %v887
        %v1124 = vunpack.c.h.b16 %v887
        %v1125 = vunpack.c.l.b16 %v888
        %v1126 = vunpack.c.h.b16 %v888
        %v1127 = vunpack.c.l.b16 %v889
        %v1128 = vunpack.c.h.b16 %v889
        %v1129 = vunpack.c.l.b16 %v890
        %v1130 = vunpack.c.h.b16 %v890
        %v1131 = vunpack.c.l.b16 %v891
        %v1132 = vunpack.c.h.b16 %v891
        %v1133 = vunpack.c.l.b16 %v892
        %v1134 = vunpack.c.h.b16 %v892
        %v1135 = vunpack.c.l.b16 %v893
        %v1136 = vunpack.c.h.b16 %v893
        %v1137 = vunpack.c.l.b16 %v894
        %v1138 = vunpack.c.h.b16 %v894
        %v1139 = vunpack.c.l.b16 %v895
        %v1140 = vunpack.c.h.b16 %v895
        %v1141 = vunpack.c.l.b16 %v896
        %v1142 = vunpack.c.h.b16 %v896
        %v1143 = vunpack.c.l.b16 %v897
        %v1144 = vunpack.c.h.b16 %v897
        %v1145 = vunpack.c.l.b16 %v898
        %v1146 = vunpack.c.h.b16 %v898
        %v1147 = vunpack.c.l.b16 %v899
        %v1148 = vunpack.c.h.b16 %v899
        %v1149 = vunpack.c.l.b16 %v900
        %v1150 = vunpack.c.h.b16 %v900
        %v1151 = vunpack.c.l.b16 %v901
        %v1152 = vunpack.c.h.b16 %v901
        %v1153 = vunpack.c.l.b16 %v902
        %v1154 = vunpack.c.h.b16 %v902
        %v1155 = vunpack.c.l.b16 %v903
        %v1156 = vunpack.c.h.b16 %v903
        %v1157 = vunpack.c.l.b16 %v904
        %v1158 = vunpack.c.h.b16 %v904
        %v1159 = vunpack.c.l.b16 %v905
        %v1160 = vunpack.c.h.b16 %v905
        %v1161 = vunpack.c.l.b16 %v906
        %v1162 = vunpack.c.h.b16 %v906
        %v1163 = vunpack.c.l.b16 %v907
        %v1164 = vunpack.c.h.b16 %v907
        %v1165 = vunpack.c.l.b16 %v908
        %v1166 = vunpack.c.h.b16 %v908
        %v1167 = vunpack.c.l.b16 %v909
        %v1168 = vunpack.c.h.b16 %v909
        %v1169 = vunpack.c.l.b16 %v910
        %v1170 = vunpack.c.h.b16 %v910
        %v1171 = vunpack.c.l.b16 %v911
        %v1172 = vunpack.c.h.b16 %v911
        %v1173 = vunpack.c.l.b16 %v912
        %v1174 = vunpack.c.h.b16 %v912
        %v1175 = vunpack.c.l.b16 %v913
        %v1176 = vunpack.c.h.b16 %v913
        %v1177 = vunpack.c.l.b16 %v914
        %v1178 = vunpack.c.h.b16 %v914
        %v1179 = vunpack.c.l.b16 %v915
        %v1180 = vunpack.c.h.b16 %v915
        %v1181 = vunpack.c.l.b16 %v916
        %v1182 = vunpack.c.h.b16 %v916
        %v1183 = vunpack.c.l.b16 %v917
        %v1184 = vunpack.c.h.b16 %v917
        %v1185 = vunpack.c.l.b16 %v918
        %v1186 = vunpack.c.h.b16 %v918
        %v1187 = vunpack.c.l.b16 %v919
        %v1188 = vunpack.c.h.b16 %v919
        %v1189 = vunpack.c.l.b16 %v920
        %v1190 = vunpack.c.h.b16 %v920
        %v1191 = vunpack.c.l.b16 %v921
        %v1192 = vunpack.c.h.b16 %v921
        %v1193 = vunpack.c.l.b16 %v922
        %v1194 = vunpack.c.h.b16 %v922
        %v1195 = vunpack.c.l.b16 %v923
        %v1196 = vunpack.c.h.b16 %v923
        %v1197 = vunpack.c.l.b16 %v924
        %v1198 = vunpack.c.h.b16 %v924
        %v1199 = vunpack.c.l.b16 %v925
        %v1200 = vunpack.c.h.b16 %v925
        %v1201 = vunpack.c.l.b16 %v926
        %v1202 = vunpack.c.h.b16 %v926
        %v1203 = vunpack.c.l.b16 %v927
        %v1204 = vunpack.c.h.b16 %v927
        %v1205 = vunpack.c.l.b16 %v928
        %v1206 = vunpack.c.h.b16 %v928
        %v1207 = vunpack.c.l.b16 %v929
        %v1208 = vunpack.c.h.b16 %v929
        %v1209 = vunpack.c.l.b16 %v930
        %v1210 = vunpack.c.h.b16 %v930
        %v1211 = vunpack.c.l.b16 %v931
        %v1212 = vunpack.c.h.b16 %v931
        %v1213 = vunpack.c.l.b16 %v932
        %v1214 = vunpack.c.h.b16 %v932
        %v1215 = vunpack.c.l.b16 %v933
        %v1216 = vunpack.c.h.b16 %v933
        %v1217 = vunpack.c.l.b16 %v934
        %v1218 = vunpack.c.h.b16 %v934
        %v1219 = vunpack.c.l.b16 %v935
        %v1220 = vunpack.c.h.b16 %v935
        %v1221 = vunpack.c.l.b16 %v936
        %v1222 = vunpack.c.h.b16 %v936
        %v1223 = vunpack.c.l.b16 %v937
        %v1224 = vunpack.c.h.b16 %v937
        %v1225 = vunpack.c.l.b16 %v938
        %v1226 = vunpack.c.h.b16 %v938
        %v1227 = vpack.c.b16 %v1047, %v1035
        %v1228 = vpack.c.b16 %v1048, %v1036
        %v1229 = vpack.c.b16 %v1049, %v1037
        %v1230 = vpack.c.b16 %v1050, %v1038
        %v1231 = vpack.c.b16 %v1051, %v1039
        %v1232 = vpack.c.b16 %v1052, %v1040
        %v1233 = vpack.c.b16 %v1053, %v1041
        %v1234 = vpack.c.b16 %v1054, %v1042
        %v1235 = vpack.c.b16 %v1055, %v1043
        %v1236 = vpack.c.b16 %v1056, %v1044
        %v1237 = vpack.c.b16 %v1057, %v1045
        %v1238 = vpack.c.b16 %v1058, %v1046
        %v1239 = vpack.c.b16 %v1071, %v1059
        %v1240 = vpack.c.b16 %v1072, %v1060
        %v1241 = vpack.c.b16 %v1073, %v1061
        %v1242 = vpack.c.b16 %v1074, %v1062
        %v1243 = vpack.c.b16 %v1075, %v1063
        %v1244 = vpack.c.b16 %v1076, %v1064
        %v1245 = vpack.c.b16 %v1077, %v1065
        %v1246 = vpack.c.b16 %v1078, %v1066
        %v1247 = vpack.c.b16 %v1079, %v1067
        %v1248 = vpack.c.b16 %v1080, %v1068
        %v1249 = vpack.c.b16 %v1081, %v1069
        %v1250 = vpack.c.b16 %v1082, %v1070
        %v1251 = vpack.c.b16 %v1095, %v1083
        %v1252 = vpack.c.b16 %v1096, %v1084
        %v1253 = vpack.c.b16 %v1097, %v1085
        %v1254 = vpack.c.b16 %v1098, %v1086
        %v1255 = vpack.c.b16 %v1099, %v1087
        %v1256 = vpack.c.b16 %v1100, %v1088
        %v1257 = vpack.c.b16 %v1101, %v1089
        %v1258 = vpack.c.b16 %v1102, %v1090
        %v1259 = vpack.c.b16 %v1103, %v1091
        %v1260 = vpack.c.b16 %v1104, %v1092
        %v1261 = vpack.c.b16 %v1105, %v1093
        %v1262 = vpack.c.b16 %v1106, %v1094
        %v1263 = vpack.c.b16 %v1119, %v1107
        %v1264 = vpack.c.b16 %v1120, %v1108
        %v1265 = vpack.c.b16 %v1121, %v1109
        %v1266 = vpack.c.b16 %v1122, %v1110
        %v1267 = vpack.c.b16 %v1123, %v1111
        %v1268 = vpack.c.b16 %v1124, %v1112
        %v1269 = vpack.c.b16 %v1125, %v1113
        %v1270 = vpack.c.b16 %v1126, %v1114
        %v1271 = vpack.c.b16 %v1127, %v1115
        %v1272 = vpack.c.b16 %v1128, %v1116
        %v1273 = vpack.c.b16 %v1129, %v1117
        %v1274 = vpack.c.b16 %v1130, %v1118
        %v1275 = vpack.c.b16 %v1143, %v1131
        %v1276 = vpack.c.b16 %v1144, %v1132
        %v1277 = vpack.c.b16 %v1145, %v1133
        %v1278 = vpack.c.b16 %v1146, %v1134
        %v1279 = vpack.c.b16 %v1147, %v1135
        %v1280 = vpack.c.b16 %v1148, %v1136
        %v1281 = vpack.c.b16 %v1149, %v1137
        %v1282 = vpack.c.b16 %v1150, %v1138
        %v1283 = vpack.c.b16 %v1151, %v1139
        %v1284 = vpack.c.b16 %v1152, %v1140
        %v1285 = vpack.c.b16 %v1153, %v1141
        %v1286 = vpack.c.b16 %v1154, %v1142
        %v1287 = vpack.c.b16 %v1167, %v1155
        %v1288 = vpack.c.b16 %v1168, %v1156
        %v1289 = vpack.c.b16 %v1169, %v1157
        %v1290 = vpack.c.b16 %v1170, %v1158
        %v1291 = vpack.c.b16 %v1171, %v1159
        %v1292 = vpack.c.b16 %v1172, %v1160
        %v1293 = vpack.c.b16 %v1173, %v1161
        %v1294 = vpack.c.b16 %v1174, %v1162
        %v1295 = vpack.c.b16 %v1175, %v1163
        %v1296 = vpack.c.b16 %v1176, %v1164
        %v1297 = vpack.c.b16 %v1177, %v1165
        %v1298 = vpack.c.b16 %v1178, %v1166
        %v1299 = vpack.c.b16 %v1191, %v1179
        %v1300 = vpack.c.b16 %v1192, %v1180
        %v1301 = vpack.c.b16 %v1193, %v1181
        %v1302 = vpack.c.b16 %v1194, %v1182
        %v1303 = vpack.c.b16 %v1195, %v1183
        %v1304 = vpack.c.b16 %v1196, %v1184
        %v1305 = vpack.c.b16 %v1197, %v1185
        %v1306 = vpack.c.b16 %v1198, %v1186
        %v1307 = vpack.c.b16 %v1199, %v1187
        %v1308 = vpack.c.b16 %v1200, %v1188
        %v1309 = vpack.c.b16 %v1201, %v1189
        %v1310 = vpack.c.b16 %v1202, %v1190
        %v1311 = vpack.c.b16 %v1215, %v1203
        %v1312 = vpack.c.b16 %v1216, %v1204
        %v1313 = vpack.c.b16 %v1217, %v1205
        %v1314 = vpack.c.b16 %v1218, %v1206
        %v1315 = vpack.c.b16 %v1219, %v1207
        %v1316 = vpack.c.b16 %v1220, %v1208
        %v1317 = vpack.c.b16 %v1221, %v1209
        %v1318 = vpack.c.b16 %v1222, %v1210
        %v1319 = vpack.c.b16 %v1223, %v1211
        %v1320 = vpack.c.b16 %v1224, %v1212
        %v1321 = vpack.c.b16 %v1225, %v1213
        %v1322 = vpack.c.b16 %v1226, %v1214
        %1419 = vmatpush.bf16.msra.mxu0 %v1311
        %1420 = vmatpush.bf16.msra.mxu0 %v1299
        %1421 = vmatpush.bf16.msra.mxu0 %v1287
        %1422 = vmatpush.bf16.msra.mxu0 %v1275
        %1423 = vmatpush.bf16.msra.mxu0 %v1263
        %1424 = vmatpush.bf16.msra.mxu0 %v1251
        %1425 = vmatpush.bf16.msra.mxu0 %v1239
        %1426 = vmatpush.bf16.msra.mxu0 %v1227
        %1427 = vmatmul.bf16.gmra.mxu0 %v842
        %v1428 = vpop.f32.mrf.mxu0
        %v1429 = vadd.f32 0.0, %v1428
        %v1430 = vpop.f32.mrf.mxu0
        %1431 = vdwg.mxu0
        %1432 = vmatpush.bf16.msra.mxu0 %v1312
        %1433 = vmatpush.bf16.msra.mxu0 %v1300
        %1434 = vmatpush.bf16.msra.mxu0 %v1288
        %1435 = vmatpush.bf16.msra.mxu0 %v1276
        %1436 = vmatpush.bf16.msra.mxu0 %v1264
        %1437 = vmatpush.bf16.msra.mxu0 %v1252
        %1438 = vmatpush.bf16.msra.mxu0 %v1240
        %1439 = vmatpush.bf16.msra.mxu0 %v1228
        %1440 = vmatmul.bf16.gmra.mxu0 %v842
        %v1441 = vpop.f32.mrf.mxu0
        %v1442 = vadd.f32 0.0, %v1441
        %v1443 = vpop.f32.mrf.mxu0
        %1444 = vdwg.mxu0
        %1445 = vmatpush.bf16.msra.mxu0 %v1313
        %1446 = vmatpush.bf16.msra.mxu0 %v1301
        %1447 = vmatpush.bf16.msra.mxu0 %v1289
        %1448 = vmatpush.bf16.msra.mxu0 %v1277
        %1449 = vmatpush.bf16.msra.mxu0 %v1265
        %1450 = vmatpush.bf16.msra.mxu0 %v1253
        %1451 = vmatpush.bf16.msra.mxu0 %v1241
        %1452 = vmatpush.bf16.msra.mxu0 %v1229
        %1453 = vmatmul.bf16.gmra.mxu0 %v842
        %v1454 = vpop.f32.mrf.mxu0
        %v1455 = vadd.f32 0.0, %v1454
        %v1456 = vpop.f32.mrf.mxu0
        %1457 = vdwg.mxu0
        %1458 = vmatpush.bf16.msra.mxu0 %v1314
        %1459 = vmatpush.bf16.msra.mxu0 %v1302
        %1460 = vmatpush.bf16.msra.mxu0 %v1290
        %1461 = vmatpush.bf16.msra.mxu0 %v1278
        %1462 = vmatpush.bf16.msra.mxu0 %v1266
        %1463 = vmatpush.bf16.msra.mxu0 %v1254
        %1464 = vmatpush.bf16.msra.mxu0 %v1242
        %1465 = vmatpush.bf16.msra.mxu0 %v1230
        %1466 = vmatmul.bf16.gmra.mxu0 %v842
        %v1467 = vpop.f32.mrf.mxu0
        %v1468 = vadd.f32 0.0, %v1467
        %v1469 = vpop.f32.mrf.mxu0
        %1470 = vdwg.mxu0
        %1471 = vmatpush.bf16.msra.mxu0 %v1315
        %1472 = vmatpush.bf16.msra.mxu0 %v1303
        %1473 = vmatpush.bf16.msra.mxu0 %v1291
        %1474 = vmatpush.bf16.msra.mxu0 %v1279
        %1475 = vmatpush.bf16.msra.mxu0 %v1267
        %1476 = vmatpush.bf16.msra.mxu0 %v1255
        %1477 = vmatpush.bf16.msra.mxu0 %v1243
        %1478 = vmatpush.bf16.msra.mxu0 %v1231
        %1479 = vmatmul.bf16.gmra.mxu0 %v842
        %v1480 = vpop.f32.mrf.mxu0
        %v1481 = vadd.f32 0.0, %v1480
        %v1482 = vpop.f32.mrf.mxu0
        %1483 = vdwg.mxu0
        %1484 = vmatpush.bf16.msra.mxu0 %v1316
        %1485 = vmatpush.bf16.msra.mxu0 %v1304
        %1486 = vmatpush.bf16.msra.mxu0 %v1292
        %1487 = vmatpush.bf16.msra.mxu0 %v1280
        %1488 = vmatpush.bf16.msra.mxu0 %v1268
        %1489 = vmatpush.bf16.msra.mxu0 %v1256
        %1490 = vmatpush.bf16.msra.mxu0 %v1244
        %1491 = vmatpush.bf16.msra.mxu0 %v1232
        %1492 = vmatmul.bf16.gmra.mxu0 %v842
        %v1493 = vpop.f32.mrf.mxu0
        %v1494 = vadd.f32 0.0, %v1493
        %v1495 = vpop.f32.mrf.mxu0
        %1496 = vdwg.mxu0
        %1497 = vmatpush.bf16.msra.mxu0 %v1317
        %1498 = vmatpush.bf16.msra.mxu0 %v1305
        %1499 = vmatpush.bf16.msra.mxu0 %v1293
        %1500 = vmatpush.bf16.msra.mxu0 %v1281
        %1501 = vmatpush.bf16.msra.mxu0 %v1269
        %1502 = vmatpush.bf16.msra.mxu0 %v1257
        %1503 = vmatpush.bf16.msra.mxu0 %v1245
        %1504 = vmatpush.bf16.msra.mxu0 %v1233
        %1505 = vmatmul.bf16.gmra.mxu0 %v842
        %v1506 = vpop.f32.mrf.mxu0
        %v1507 = vadd.f32 0.0, %v1506
        %v1508 = vpop.f32.mrf.mxu0
        %1509 = vdwg.mxu0
        %1510 = vmatpush.bf16.msra.mxu0 %v1318
        %1511 = vmatpush.bf16.msra.mxu0 %v1306
        %1512 = vmatpush.bf16.msra.mxu0 %v1294
        %1513 = vmatpush.bf16.msra.mxu0 %v1282
        %1514 = vmatpush.bf16.msra.mxu0 %v1270
        %1515 = vmatpush.bf16.msra.mxu0 %v1258
        %1516 = vmatpush.bf16.msra.mxu0 %v1246
        %1517 = vmatpush.bf16.msra.mxu0 %v1234
        %1518 = vmatmul.bf16.gmra.mxu0 %v842
        %v1519 = vpop.f32.mrf.mxu0
        %v1520 = vadd.f32 0.0, %v1519
        %v1521 = vpop.f32.mrf.mxu0
        %1522 = vdwg.mxu0
        %1523 = vmatpush.bf16.msra.mxu0 %v1319
        %1524 = vmatpush.bf16.msra.mxu0 %v1307
        %1525 = vmatpush.bf16.msra.mxu0 %v1295
        %1526 = vmatpush.bf16.msra.mxu0 %v1283
        %1527 = vmatpush.bf16.msra.mxu0 %v1271
        %1528 = vmatpush.bf16.msra.mxu0 %v1259
        %1529 = vmatpush.bf16.msra.mxu0 %v1247
        %1530 = vmatpush.bf16.msra.mxu0 %v1235
        %1531 = vmatmul.bf16.gmra.mxu0 %v842
        %v1532 = vpop.f32.mrf.mxu0
        %v1533 = vadd.f32 0.0, %v1532
        %v1534 = vpop.f32.mrf.mxu0
        %1535 = vdwg.mxu0
        %1536 = vmatpush.bf16.msra.mxu0 %v1320
        %1537 = vmatpush.bf16.msra.mxu0 %v1308
        %1538 = vmatpush.bf16.msra.mxu0 %v1296
        %1539 = vmatpush.bf16.msra.mxu0 %v1284
        %1540 = vmatpush.bf16.msra.mxu0 %v1272
        %1541 = vmatpush.bf16.msra.mxu0 %v1260
        %1542 = vmatpush.bf16.msra.mxu0 %v1248
        %1543 = vmatpush.bf16.msra.mxu0 %v1236
        %1544 = vmatmul.bf16.gmra.mxu0 %v842
        %v1545 = vpop.f32.mrf.mxu0
        %v1546 = vadd.f32 0.0, %v1545
        %v1547 = vpop.f32.mrf.mxu0
        %1548 = vdwg.mxu0
        %1549 = vmatpush.bf16.msra.mxu0 %v1321
        %1550 = vmatpush.bf16.msra.mxu0 %v1309
        %1551 = vmatpush.bf16.msra.mxu0 %v1297
        %1552 = vmatpush.bf16.msra.mxu0 %v1285
        %1553 = vmatpush.bf16.msra.mxu0 %v1273
        %1554 = vmatpush.bf16.msra.mxu0 %v1261
        %1555 = vmatpush.bf16.msra.mxu0 %v1249
        %1556 = vmatpush.bf16.msra.mxu0 %v1237
        %1557 = vmatmul.bf16.gmra.mxu0 %v842
        %v1558 = vpop.f32.mrf.mxu0
        %v1559 = vadd.f32 0.0, %v1558
        %v1560 = vpop.f32.mrf.mxu0
        %1561 = vdwg.mxu0
        %1562 = vmatpush.bf16.msra.mxu0 %v1322
        %1563 = vmatpush.bf16.msra.mxu0 %v1310
        %1564 = vmatpush.bf16.msra.mxu0 %v1298
        %1565 = vmatpush.bf16.msra.mxu0 %v1286
        %1566 = vmatpush.bf16.msra.mxu0 %v1274
        %1567 = vmatpush.bf16.msra.mxu0 %v1262
        %1568 = vmatpush.bf16.msra.mxu0 %v1250
        %1569 = vmatpush.bf16.msra.mxu0 %v1238
        %1570 = vmatmul.bf16.gmra.mxu0 %v842
        %v1571 = vpop.f32.mrf.mxu0
        %v1572 = vadd.f32 0.0, %v1571
        %v1573 = vpop.f32.mrf.mxu0
        %1574 = vdwg.mxu0
        %v1575 = vpack.c.bf16 %v1429, %v1429
        %v1576 = vpack.c.bf16 %v1481, %v1481
        %v1577 = vpack.c.bf16 %v1533, %v1533
        %1578 = vmatpush.bf16.xpose.msra.mxu0 0
        %1579 = vmatpush.bf16.xpose.msra.mxu0 0
        %1580 = vmatpush.bf16.xpose.msra.mxu0 0
        %1581 = vmatpush.bf16.xpose.msra.mxu0 0
        %1582 = vmatpush.bf16.xpose.msra.mxu0 0
        %1583 = vmatpush.bf16.xpose.msra.mxu0 0
        %1584 = vmatpush.bf16.xpose.msra.mxu0 0
        %1585 = vmatpush.bf16.xpose.msra.mxu0 %v1576
        %1586 = vmatmul.bf16.gmra.mxu0 %v1575
        %v1587 = vpop.f32.mrf.mxu0
        %v1588 = vadd.f32 %v809, %v1587
        %v1589 = vpop.f32.mrf.mxu0
        %1590 = vdwg.mxu0
        %vm1591 = vcmask 64512
        %v1592 = vsel %vm1591, %v1588, -inf
        %1593 = vmax.xlane.f32.xlu0 %v1592
        %v1594 = vpop.xlane.xlu0 %1593
        %v1595 = vsub.f32 %v1588, %v1594
        %v1596 = vmul.f32 %v1595, 1.442695
        %v1597 = vpow.pop %v1596
        %v1598 = vsel %vm1591, %v1597, 0.0
        %1599 = vadd.xlane.f32.xlu0 %v1598
        %v1600 = vpop.xlane.xlu0 %1599
        %v1601 = vrcp.pop %v1600
        %v1602 = vmul.f32 %v1597, %v1601
        %v1603 = vpack.c.bf16 %v1602, %v1602
        %v1605 = vsel %vm1591, %v1603, 0
        %vm1607 = vcmask 1043456
        %v1609 = vsel %vm1607, %v1577, 0
        %1611 = vmatpush.bf16.msra.mxu0 0
        %1612 = vmatpush.bf16.msra.mxu0 0
        %1613 = vmatpush.bf16.msra.mxu0 0
        %1614 = vmatpush.bf16.msra.mxu0 0
        %1615 = vmatpush.bf16.msra.mxu0 0
        %1616 = vmatpush.bf16.msra.mxu0 0
        %1617 = vmatpush.bf16.msra.mxu0 0
        %1618 = vmatpush.bf16.msra.mxu0 %v1609
        %1619 = vmatmul.bf16.gmra.mxu0 %v1605
        %v1620 = vpop.f32.mrf.mxu0
        %v1621 = vadd.f32 0.0, %v1620
        %v1622 = vpop.f32.mrf.mxu0
        %1623 = vdwg.mxu0
        %1624 = vst [vmem:[#allocation2] sm:$0xff] %v1621
        %v1625 = vpack.c.bf16 %v1442, %v1442
        %v1626 = vpack.c.bf16 %v1494, %v1494
        %v1627 = vpack.c.bf16 %v1546, %v1546
        %1628 = vmatpush.bf16.xpose.msra.mxu0 0
        %1629 = vmatpush.bf16.xpose.msra.mxu0 0
        %1630 = vmatpush.bf16.xpose.msra.mxu0 0
        %1631 = vmatpush.bf16.xpose.msra.mxu0 0
        %1632 = vmatpush.bf16.xpose.msra.mxu0 0
        %1633 = vmatpush.bf16.xpose.msra.mxu0 0
        %1634 = vmatpush.bf16.xpose.msra.mxu0 0
        %1635 = vmatpush.bf16.xpose.msra.mxu0 %v1626
        %1636 = vmatmul.bf16.gmra.mxu0 %v1625
        %v1637 = vpop.f32.mrf.mxu0
        %v1638 = vadd.f32 %v809, %v1637
        %v1639 = vpop.f32.mrf.mxu0
        %1640 = vdwg.mxu0
        %v1641 = vsel %vm1591, %v1638, -inf
        %1642 = vmax.xlane.f32.xlu0 %v1641
        %v1643 = vpop.xlane.xlu0 %1642
        %v1644 = vsub.f32 %v1638, %v1643
        %v1645 = vmul.f32 %v1644, 1.442695
        %v1646 = vpow.pop %v1645
        %v1647 = vsel %vm1591, %v1646, 0.0
        %1648 = vadd.xlane.f32.xlu0 %v1647
        %v1649 = vpop.xlane.xlu0 %1648
        %v1650 = vrcp.pop %v1649
        %v1651 = vmul.f32 %v1646, %v1650
        %v1652 = vpack.c.bf16 %v1651, %v1651
        %v1654 = vsel %vm1591, %v1652, 0
        %v1657 = vsel %vm1607, %v1627, 0
        %1659 = vmatpush.bf16.msra.mxu0 0
        %1660 = vmatpush.bf16.msra.mxu0 0
        %1661 = vmatpush.bf16.msra.mxu0 0
        %1662 = vmatpush.bf16.msra.mxu0 0
        %1663 = vmatpush.bf16.msra.mxu0 0
        %1664 = vmatpush.bf16.msra.mxu0 0
        %1665 = vmatpush.bf16.msra.mxu0 0
        %1666 = vmatpush.bf16.msra.mxu0 %v1657
        %1667 = vmatmul.bf16.gmra.mxu0 %v1654
        %v1668 = vpop.f32.mrf.mxu0
        %v1669 = vadd.f32 0.0, %v1668
        %v1670 = vpop.f32.mrf.mxu0
        %1671 = vdwg.mxu0
        %1672 = vst [vmem:[#allocation2 + $0x8] sm:$0xff] %v1669
        %v1673 = vpack.c.bf16 %v1455, %v1455
        %v1674 = vpack.c.bf16 %v1507, %v1507
        %v1675 = vpack.c.bf16 %v1559, %v1559
        %1676 = vmatpush.bf16.xpose.msra.mxu0 0
        %1677 = vmatpush.bf16.xpose.msra.mxu0 0
        %1678 = vmatpush.bf16.xpose.msra.mxu0 0
        %1679 = vmatpush.bf16.xpose.msra.mxu0 0
        %1680 = vmatpush.bf16.xpose.msra.mxu0 0
        %1681 = vmatpush.bf16.xpose.msra.mxu0 0
        %1682 = vmatpush.bf16.xpose.msra.mxu0 0
        %1683 = vmatpush.bf16.xpose.msra.mxu0 %v1674
        %1684 = vmatmul.bf16.gmra.mxu0 %v1673
        %v1685 = vpop.f32.mrf.mxu0
        %v1686 = vadd.f32 %v809, %v1685
        %v1687 = vpop.f32.mrf.mxu0
        %1688 = vdwg.mxu0
        %v1689 = vsel %vm1591, %v1686, -inf
        %1690 = vmax.xlane.f32.xlu0 %v1689
        %v1691 = vpop.xlane.xlu0 %1690
        %v1692 = vsub.f32 %v1686, %v1691
        %v1693 = vmul.f32 %v1692, 1.442695
        %v1694 = vpow.pop %v1693
        %v1695 = vsel %vm1591, %v1694, 0.0
        %1696 = vadd.xlane.f32.xlu0 %v1695
        %v1697 = vpop.xlane.xlu0 %1696
        %v1698 = vrcp.pop %v1697
        %v1699 = vmul.f32 %v1694, %v1698
        %v1700 = vpack.c.bf16 %v1699, %v1699
        %v1702 = vsel %vm1591, %v1700, 0
        %v1705 = vsel %vm1607, %v1675, 0
        %1707 = vmatpush.bf16.msra.mxu0 0
        %1708 = vmatpush.bf16.msra.mxu0 0
        %1709 = vmatpush.bf16.msra.mxu0 0
        %1710 = vmatpush.bf16.msra.mxu0 0
        %1711 = vmatpush.bf16.msra.mxu0 0
        %1712 = vmatpush.bf16.msra.mxu0 0
        %1713 = vmatpush.bf16.msra.mxu0 0
        %1714 = vmatpush.bf16.msra.mxu0 %v1705
        %1715 = vmatmul.bf16.gmra.mxu0 %v1702
        %v1716 = vpop.f32.mrf.mxu0
        %v1717 = vadd.f32 0.0, %v1716
        %v1718 = vpop.f32.mrf.mxu0
        %1719 = vdwg.mxu0
        %1720 = vst [vmem:[#allocation2 + $0x10] sm:$0xff] %v1717
        %v1721 = vpack.c.bf16 %v1468, %v1468
        %v1722 = vpack.c.bf16 %v1520, %v1520
        %v1723 = vpack.c.bf16 %v1572, %v1572
        %1724 = vmatpush.bf16.xpose.msra.mxu0 0
        %1725 = vmatpush.bf16.xpose.msra.mxu0 0
        %1726 = vmatpush.bf16.xpose.msra.mxu0 0
        %1727 = vmatpush.bf16.xpose.msra.mxu0 0
        %1728 = vmatpush.bf16.xpose.msra.mxu0 0
        %1729 = vmatpush.bf16.xpose.msra.mxu0 0
        %1730 = vmatpush.bf16.xpose.msra.mxu0 0
        %1731 = vmatpush.bf16.xpose.msra.mxu0 %v1722
        %1732 = vmatmul.bf16.gmra.mxu0 %v1721
        %v1733 = vpop.f32.mrf.mxu0
        %v1734 = vadd.f32 %v809, %v1733
        %v1735 = vpop.f32.mrf.mxu0
        %1736 = vdwg.mxu0
        %v1737 = vsel %vm1591, %v1734, -inf
        %1738 = vmax.xlane.f32.xlu0 %v1737
        %v1739 = vpop.xlane.xlu0 %1738
        %v1740 = vsub.f32 %v1734, %v1739
        %v1741 = vmul.f32 %v1740, 1.442695
        %v1742 = vpow.pop %v1741
        %v1743 = vsel %vm1591, %v1742, 0.0
        %1744 = vadd.xlane.f32.xlu0 %v1743
        %v1745 = vpop.xlane.xlu0 %1744
        %v1746 = vrcp.pop %v1745
        %v1747 = vmul.f32 %v1742, %v1746
        %v1748 = vpack.c.bf16 %v1747, %v1747
        %v1750 = vsel %vm1591, %v1748, 0
        %v1753 = vsel %vm1607, %v1723, 0
        %1755 = vmatpush.bf16.msra.mxu0 0
        %1756 = vmatpush.bf16.msra.mxu0 0
        %1757 = vmatpush.bf16.msra.mxu0 0
        %1758 = vmatpush.bf16.msra.mxu0 0
        %1759 = vmatpush.bf16.msra.mxu0 0
        %1760 = vmatpush.bf16.msra.mxu0 0
        %1761 = vmatpush.bf16.msra.mxu0 0
        %1762 = vmatpush.bf16.msra.mxu0 %v1753
        %1763 = vmatmul.bf16.gmra.mxu0 %v1750
        %v1764 = vpop.f32.mrf.mxu0
        %v1765 = vadd.f32 0.0, %v1764
        %v1766 = vpop.f32.mrf.mxu0
        %1767 = vdwg.mxu0
        %1768 = vst [vmem:[#allocation2 + $0x18] sm:$0xff] %v1765
        %v1769 = vld [vmem:[#allocation2] sm:$0xff]
        %v1770 = vld [vmem:[#allocation2 + $0x8] sm:$0xff]
        %v1771 = vld [vmem:[#allocation2 + $0x10] sm:$0xff]
        %v1772 = vld [vmem:[#allocation2 + $0x18] sm:$0xff]
        %v1773 = vpack.c.bf16 %v1769, %v1769
        %v1774 = vpack.c.bf16 %v1770, %v1770
        %v1775 = vpack.c.bf16 %v1771, %v1771
        %v1776 = vpack.c.bf16 %v1772, %v1772
        %v1777 = vld [vmem:[%s672] sm:$0xf]
        %v1778 = vld [vmem:[%s672 + $0x4] sm:$0xf]
        %v1779 = vld [vmem:[%s672 + $0x8] sm:$0xf]
        %v1780 = vld [vmem:[%s672 + $0xc] sm:$0xf]
        %v1781 = vld [vmem:[%s672 + $0x10] sm:$0xf]
        %v1782 = vld [vmem:[%s672 + $0x14] sm:$0xf]
        %v1783 = vld [vmem:[%s672 + $0x18] sm:$0xf]
        %v1784 = vld [vmem:[%s672 + $0x1c] sm:$0xf]
        %v1785 = vld [vmem:[%s672 + $0x20] sm:$0xf]
        %v1786 = vld [vmem:[%s672 + $0x24] sm:$0xf]
        %v1787 = vld [vmem:[%s672 + $0x28] sm:$0xf]
        %v1788 = vld [vmem:[%s672 + $0x2c] sm:$0xf]
        %v1789 = vld [vmem:[%s672 + $0x30] sm:$0xf]
        %v1790 = vld [vmem:[%s672 + $0x34] sm:$0xf]
        %v1791 = vld [vmem:[%s672 + $0x38] sm:$0xf]
        %v1792 = vld [vmem:[%s672 + $0x3c] sm:$0xf]
        %v1793 = vld [vmem:[%s672 + $0x40] sm:$0xf]
        %v1794 = vld [vmem:[%s672 + $0x44] sm:$0xf]
        %v1795 = vld [vmem:[%s672 + $0x48] sm:$0xf]
        %v1796 = vld [vmem:[%s672 + $0x4c] sm:$0xf]
        %v1797 = vld [vmem:[%s672 + $0x50] sm:$0xf]
        %v1798 = vld [vmem:[%s672 + $0x54] sm:$0xf]
        %v1799 = vld [vmem:[%s672 + $0x58] sm:$0xf]
        %v1800 = vld [vmem:[%s672 + $0x5c] sm:$0xf]
        %v1801 = vld [vmem:[%s672 + $0x60] sm:$0xf]
        %v1802 = vld [vmem:[%s672 + $0x64] sm:$0xf]
        %v1803 = vld [vmem:[%s672 + $0x68] sm:$0xf]
        %v1804 = vld [vmem:[%s672 + $0x6c] sm:$0xf]
        %v1805 = vld [vmem:[%s672 + $0x70] sm:$0xf]
        %v1806 = vld [vmem:[%s672 + $0x74] sm:$0xf]
        %v1807 = vld [vmem:[%s672 + $0x78] sm:$0xf]
        %v1808 = vld [vmem:[%s672 + $0x7c] sm:$0xf]
        %v1809 = vld [vmem:[%s672 + $0x80] sm:$0xf]
        %v1810 = vld [vmem:[%s672 + $0x84] sm:$0xf]
        %v1811 = vld [vmem:[%s672 + $0x88] sm:$0xf]
        %v1812 = vld [vmem:[%s672 + $0x8c] sm:$0xf]
        %v1813 = vld [vmem:[%s672 + $0x90] sm:$0xf]
        %v1814 = vld [vmem:[%s672 + $0x94] sm:$0xf]
        %v1815 = vld [vmem:[%s672 + $0x98] sm:$0xf]
        %v1816 = vld [vmem:[%s672 + $0x9c] sm:$0xf]
        %v1817 = vld [vmem:[%s672 + $0xa0] sm:$0xf]
        %v1818 = vld [vmem:[%s672 + $0xa4] sm:$0xf]
        %v1819 = vld [vmem:[%s672 + $0xa8] sm:$0xf]
        %v1820 = vld [vmem:[%s672 + $0xac] sm:$0xf]
        %v1821 = vld [vmem:[%s672 + $0xb0] sm:$0xf]
        %v1822 = vld [vmem:[%s672 + $0xb4] sm:$0xf]
        %v1823 = vld [vmem:[%s672 + $0xb8] sm:$0xf]
        %v1824 = vld [vmem:[%s672 + $0xbc] sm:$0xf]
        %v1825 = vld [vmem:[%s672 + $0xc0] sm:$0xf]
        %v1826 = vld [vmem:[%s672 + $0xc4] sm:$0xf]
        %v1827 = vld [vmem:[%s672 + $0xc8] sm:$0xf]
        %v1828 = vld [vmem:[%s672 + $0xcc] sm:$0xf]
        %v1829 = vld [vmem:[%s672 + $0xd0] sm:$0xf]
        %v1830 = vld [vmem:[%s672 + $0xd4] sm:$0xf]
        %v1831 = vld [vmem:[%s672 + $0xd8] sm:$0xf]
        %v1832 = vld [vmem:[%s672 + $0xdc] sm:$0xf]
        %v1833 = vld [vmem:[%s672 + $0xe0] sm:$0xf]
        %v1834 = vld [vmem:[%s672 + $0xe4] sm:$0xf]
        %v1835 = vld [vmem:[%s672 + $0xe8] sm:$0xf]
        %v1836 = vld [vmem:[%s672 + $0xec] sm:$0xf]
        %v1837 = vld [vmem:[%s672 + $0xf0] sm:$0xf]
        %v1838 = vld [vmem:[%s672 + $0xf4] sm:$0xf]
        %v1839 = vld [vmem:[%s672 + $0xf8] sm:$0xf]
        %v1840 = vld [vmem:[%s672 + $0xfc] sm:$0xf]
        %v1841 = vld [vmem:[%s783] sm:$0x1]
        %v1843 = vperm.slane %v1841, 0
        %v1909 = vunpack.c.l.b16 %v1777
        %v1910 = vunpack.c.l.b16 %v1778
        %v1911 = vunpack.c.l.b16 %v1779
        %v1912 = vunpack.c.l.b16 %v1780
        %v1913 = vunpack.c.l.b16 %v1781
        %v1914 = vunpack.c.l.b16 %v1782
        %v1915 = vunpack.c.l.b16 %v1783
        %v1916 = vunpack.c.l.b16 %v1784
        %v1917 = vunpack.c.l.b16 %v1785
        %v1918 = vunpack.c.l.b16 %v1786
        %v1919 = vunpack.c.l.b16 %v1787
        %v1920 = vunpack.c.l.b16 %v1788
        %v1921 = vunpack.c.l.b16 %v1789
        %v1922 = vunpack.c.l.b16 %v1790
        %v1923 = vunpack.c.l.b16 %v1791
        %v1924 = vunpack.c.l.b16 %v1792
        %v1925 = vunpack.c.l.b16 %v1793
        %v1926 = vunpack.c.l.b16 %v1794
        %v1927 = vunpack.c.l.b16 %v1795
        %v1928 = vunpack.c.l.b16 %v1796
        %v1929 = vunpack.c.l.b16 %v1797
        %v1930 = vunpack.c.l.b16 %v1798
        %v1931 = vunpack.c.l.b16 %v1799
        %v1932 = vunpack.c.l.b16 %v1800
        %v1933 = vunpack.c.l.b16 %v1801
        %v1934 = vunpack.c.l.b16 %v1802
        %v1935 = vunpack.c.l.b16 %v1803
        %v1936 = vunpack.c.l.b16 %v1804
        %v1937 = vunpack.c.l.b16 %v1805
        %v1938 = vunpack.c.l.b16 %v1806
        %v1939 = vunpack.c.l.b16 %v1807
        %v1940 = vunpack.c.l.b16 %v1808
        %v1941 = vunpack.c.l.b16 %v1809
        %v1942 = vunpack.c.l.b16 %v1810
        %v1943 = vunpack.c.l.b16 %v1811
        %v1944 = vunpack.c.l.b16 %v1812
        %v1945 = vunpack.c.l.b16 %v1813
        %v1946 = vunpack.c.l.b16 %v1814
        %v1947 = vunpack.c.l.b16 %v1815
        %v1948 = vunpack.c.l.b16 %v1816
        %v1949 = vunpack.c.l.b16 %v1817
        %v1950 = vunpack.c.l.b16 %v1818
        %v1951 = vunpack.c.l.b16 %v1819
        %v1952 = vunpack.c.l.b16 %v1820
        %v1953 = vunpack.c.l.b16 %v1821
        %v1954 = vunpack.c.l.b16 %v1822
        %v1955 = vunpack.c.l.b16 %v1823
        %v1956 = vunpack.c.l.b16 %v1824
        %v1957 = vunpack.c.l.b16 %v1825
        %v1958 = vunpack.c.l.b16 %v1826
        %v1959 = vunpack.c.l.b16 %v1827
        %v1960 = vunpack.c.l.b16 %v1828
        %v1961 = vunpack.c.l.b16 %v1829
        %v1962 = vunpack.c.l.b16 %v1830
        %v1963 = vunpack.c.l.b16 %v1831
        %v1964 = vunpack.c.l.b16 %v1832
        %v1965 = vunpack.c.l.b16 %v1833
        %v1966 = vunpack.c.l.b16 %v1834
        %v1967 = vunpack.c.l.b16 %v1835
        %v1968 = vunpack.c.l.b16 %v1836
        %v1969 = vunpack.c.l.b16 %v1837
        %v1970 = vunpack.c.l.b16 %v1838
        %v1971 = vunpack.c.l.b16 %v1839
        %v1972 = vunpack.c.l.b16 %v1840
        %v1973 = vpack.c.b16 %v1910, %v1909
        %v1974 = vpack.c.b16 %v1912, %v1911
        %v1975 = vpack.c.b16 %v1914, %v1913
        %v1976 = vpack.c.b16 %v1916, %v1915
        %v1977 = vpack.c.b16 %v1918, %v1917
        %v1978 = vpack.c.b16 %v1920, %v1919
        %v1979 = vpack.c.b16 %v1922, %v1921
        %v1980 = vpack.c.b16 %v1924, %v1923
        %v1981 = vpack.c.b16 %v1926, %v1925
        %v1982 = vpack.c.b16 %v1928, %v1927
        %v1983 = vpack.c.b16 %v1930, %v1929
        %v1984 = vpack.c.b16 %v1932, %v1931
        %v1985 = vpack.c.b16 %v1934, %v1933
        %v1986 = vpack.c.b16 %v1936, %v1935
        %v1987 = vpack.c.b16 %v1938, %v1937
        %v1988 = vpack.c.b16 %v1940, %v1939
        %v1989 = vpack.c.b16 %v1942, %v1941
        %v1990 = vpack.c.b16 %v1944, %v1943
        %v1991 = vpack.c.b16 %v1946, %v1945
        %v1992 = vpack.c.b16 %v1948, %v1947
        %v1993 = vpack.c.b16 %v1950, %v1949
        %v1994 = vpack.c.b16 %v1952, %v1951
        %v1995 = vpack.c.b16 %v1954, %v1953
        %v1996 = vpack.c.b16 %v1956, %v1955
        %v1997 = vpack.c.b16 %v1958, %v1957
        %v1998 = vpack.c.b16 %v1960, %v1959
        %v1999 = vpack.c.b16 %v1962, %v1961
        %v2000 = vpack.c.b16 %v1964, %v1963
        %v2001 = vpack.c.b16 %v1966, %v1965
        %v2002 = vpack.c.b16 %v1968, %v1967
        %v2003 = vpack.c.b16 %v1970, %v1969
        %v2004 = vpack.c.b16 %v1972, %v1971
        %2037 = vmatpush.bf16.msra.mxu0 %v1980
        %2038 = vmatpush.bf16.msra.mxu0 %v1979
        %2039 = vmatpush.bf16.msra.mxu0 %v1978
        %2040 = vmatpush.bf16.msra.mxu0 %v1977
        %2041 = vmatpush.bf16.msra.mxu0 %v1976
        %2042 = vmatpush.bf16.msra.mxu0 %v1975
        %2043 = vmatpush.bf16.msra.mxu0 %v1974
        %2044 = vmatpush.bf16.msra.mxu0 %v1973
        %2045 = vmatmul.bf16.gmra.mxu0 %v1773
        %v2046 = vpop.f32.mrf.mxu0
        %v2047 = vadd.f32 %v1843, %v2046
        %v2048 = vpop.f32.mrf.mxu0
        %2049 = vdwg.mxu0
        %2050 = vmatpush.bf16.msra.mxu0 %v1988
        %2051 = vmatpush.bf16.msra.mxu0 %v1987
        %2052 = vmatpush.bf16.msra.mxu0 %v1986
        %2053 = vmatpush.bf16.msra.mxu0 %v1985
        %2054 = vmatpush.bf16.msra.mxu0 %v1984
        %2055 = vmatpush.bf16.msra.mxu0 %v1983
        %2056 = vmatpush.bf16.msra.mxu0 %v1982
        %2057 = vmatpush.bf16.msra.mxu0 %v1981
        %2058 = vmatmul.bf16.gmra.mxu0 %v1774
        %v2059 = vpop.f32.mrf.mxu0
        %v2060 = vadd.f32 %v2047, %v2059
        %v2061 = vpop.f32.mrf.mxu0
        %2062 = vdwg.mxu0
        %2063 = vmatpush.bf16.msra.mxu0 %v1996
        %2064 = vmatpush.bf16.msra.mxu0 %v1995
        %2065 = vmatpush.bf16.msra.mxu0 %v1994
        %2066 = vmatpush.bf16.msra.mxu0 %v1993
        %2067 = vmatpush.bf16.msra.mxu0 %v1992
        %2068 = vmatpush.bf16.msra.mxu0 %v1991
        %2069 = vmatpush.bf16.msra.mxu0 %v1990
        %2070 = vmatpush.bf16.msra.mxu0 %v1989
        %2071 = vmatmul.bf16.gmra.mxu0 %v1775
        %v2072 = vpop.f32.mrf.mxu0
        %v2073 = vadd.f32 %v2060, %v2072
        %v2074 = vpop.f32.mrf.mxu0
        %2075 = vdwg.mxu0
        %2076 = vmatpush.bf16.msra.mxu0 %v2004
        %2077 = vmatpush.bf16.msra.mxu0 %v2003
        %2078 = vmatpush.bf16.msra.mxu0 %v2002
        %2079 = vmatpush.bf16.msra.mxu0 %v2001
        %2080 = vmatpush.bf16.msra.mxu0 %v2000
        %2081 = vmatpush.bf16.msra.mxu0 %v1999
        %2082 = vmatpush.bf16.msra.mxu0 %v1998
        %2083 = vmatpush.bf16.msra.mxu0 %v1997
        %2084 = vmatmul.bf16.gmra.mxu0 %v1776
        %v2085 = vpop.f32.mrf.mxu0
        %v2086 = vadd.f32 %v2073, %v2085
        %v2087 = vpop.f32.mrf.mxu0
        %2088 = vdwg.mxu0
        %v2089 = vadd.f32 %v803, %v2086
        %v2090 = vld [vmem:[%s786] sm:$0x1]
        %v2091 = vld [vmem:[%s789] sm:$0x1]
        %2092 = vadd.xlane.f32.xlu0 %v2089
        %v2093 = vpop.xlane.xlu0 %2092
        %v2094 = vmul.f32 %v2093, 0.03125
        %v2095 = vsub.f32 %v2089, %v2094
        %v2096 = vsel %vm812, %v2095, 0.0
        %v2097 = vmul.f32 %v2096, %v2096
        %2098 = vadd.xlane.f32.xlu0 %v2097
        %v2099 = vpop.xlane.xlu0 %2098
        %v2100 = vmul.f32 %v2099, 0.03125
        %v2101 = vadd.f32 %v2100, 1e-05
        %v2102 = vrsqrt.pop %v2101
        %v2103 = vmul.f32 %v2102, %v2101
        %v2104 = vmul.f32 %v2103, %v2102
        %v2105 = vmul.f32 0.5, %v2104
        %v2106 = vsub.f32 1.5, %v2105
        %v2107 = vmul.f32 %v2102, %v2106
        %vm2108 = vweird.f32 %v2101
        %vm2109 = vweird.f32 %v2102
        %vm2110 = vmor %vm2108, %vm2109
        %v2111 = vsel %vm2110, %v2102, %v2107
        %v2112 = vmul.f32 %v2096, %v2111
        %v2114 = vperm.slane %v2090, 0
        %v2116 = vmul.f32 %v2112, %v2114
        %v2118 = vperm.slane %v2091, 0
        %v2120 = vadd.f32 %v2116, %v2118
        %v2121 = vpack.c.bf16 %v2120, %v2120
        %v2122 = vld [vmem:[%s682] sm:$0xf]
        %v2123 = vld [vmem:[%s682 + $0x4] sm:$0xf]
        %v2124 = vld [vmem:[%s682 + $0x8] sm:$0xf]
        %v2125 = vld [vmem:[%s682 + $0xc] sm:$0xf]
        %v2126 = vld [vmem:[%s682 + $0x10] sm:$0xf]
        %v2127 = vld [vmem:[%s682 + $0x14] sm:$0xf]
        %v2128 = vld [vmem:[%s682 + $0x18] sm:$0xf]
        %v2129 = vld [vmem:[%s682 + $0x1c] sm:$0xf]
        %v2130 = vld [vmem:[%s682 + $0x20] sm:$0xf]
        %v2131 = vld [vmem:[%s682 + $0x24] sm:$0xf]
        %v2132 = vld [vmem:[%s682 + $0x28] sm:$0xf]
        %v2133 = vld [vmem:[%s682 + $0x2c] sm:$0xf]
        %v2134 = vld [vmem:[%s682 + $0x30] sm:$0xf]
        %v2135 = vld [vmem:[%s682 + $0x34] sm:$0xf]
        %v2136 = vld [vmem:[%s682 + $0x38] sm:$0xf]
        %v2137 = vld [vmem:[%s682 + $0x3c] sm:$0xf]
        %v2138 = vld [vmem:[%s792] sm:$0x1]
        %v2140 = vperm.slane %v2138, 0
        %v2158 = vunpack.c.l.b16 %v2122
        %v2159 = vunpack.c.l.b16 %v2123
        %v2160 = vunpack.c.l.b16 %v2124
        %v2161 = vunpack.c.l.b16 %v2125
        %v2162 = vunpack.c.l.b16 %v2126
        %v2163 = vunpack.c.l.b16 %v2127
        %v2164 = vunpack.c.l.b16 %v2128
        %v2165 = vunpack.c.l.b16 %v2129
        %v2166 = vunpack.c.l.b16 %v2130
        %v2167 = vunpack.c.l.b16 %v2131
        %v2168 = vunpack.c.l.b16 %v2132
        %v2169 = vunpack.c.l.b16 %v2133
        %v2170 = vunpack.c.l.b16 %v2134
        %v2171 = vunpack.c.l.b16 %v2135
        %v2172 = vunpack.c.l.b16 %v2136
        %v2173 = vunpack.c.l.b16 %v2137
        %v2174 = vpack.c.b16 %v2159, %v2158
        %v2175 = vpack.c.b16 %v2161, %v2160
        %v2176 = vpack.c.b16 %v2163, %v2162
        %v2177 = vpack.c.b16 %v2165, %v2164
        %v2178 = vpack.c.b16 %v2167, %v2166
        %v2179 = vpack.c.b16 %v2169, %v2168
        %v2180 = vpack.c.b16 %v2171, %v2170
        %v2181 = vpack.c.b16 %v2173, %v2172
        %2190 = vmatpush.bf16.msra.mxu0 %v2181
        %2191 = vmatpush.bf16.msra.mxu0 %v2180
        %2192 = vmatpush.bf16.msra.mxu0 %v2179
        %2193 = vmatpush.bf16.msra.mxu0 %v2178
        %2194 = vmatpush.bf16.msra.mxu0 %v2177
        %2195 = vmatpush.bf16.msra.mxu0 %v2176
        %2196 = vmatpush.bf16.msra.mxu0 %v2175
        %2197 = vmatpush.bf16.msra.mxu0 %v2174
        %2198 = vmatmul.bf16.gmra.mxu0 %v2121
        %v2199 = vpop.f32.mrf.mxu0
        %v2200 = vadd.f32 %v2140, %v2199
        %v2201 = vpop.f32.mrf.mxu0
        %2202 = vdwg.mxu0
        %v2203 = vmax.f32 %v2200, 0.0
        %v2204 = vpack.c.bf16 %v2203, %v2203
        %v2205 = vld [vmem:[%s692] sm:$0xf]
        %v2206 = vld [vmem:[%s692 + $0x4] sm:$0xf]
        %v2207 = vld [vmem:[%s692 + $0x8] sm:$0xf]
        %v2208 = vld [vmem:[%s692 + $0xc] sm:$0xf]
        %v2209 = vld [vmem:[%s692 + $0x10] sm:$0xf]
        %v2210 = vld [vmem:[%s692 + $0x14] sm:$0xf]
        %v2211 = vld [vmem:[%s692 + $0x18] sm:$0xf]
        %v2212 = vld [vmem:[%s692 + $0x1c] sm:$0xf]
        %v2213 = vld [vmem:[%s692 + $0x20] sm:$0xf]
        %v2214 = vld [vmem:[%s692 + $0x24] sm:$0xf]
        %v2215 = vld [vmem:[%s692 + $0x28] sm:$0xf]
        %v2216 = vld [vmem:[%s692 + $0x2c] sm:$0xf]
        %v2217 = vld [vmem:[%s692 + $0x30] sm:$0xf]
        %v2218 = vld [vmem:[%s692 + $0x34] sm:$0xf]
        %v2219 = vld [vmem:[%s692 + $0x38] sm:$0xf]
        %v2220 = vld [vmem:[%s692 + $0x3c] sm:$0xf]
        %v2221 = vld [vmem:[%s795] sm:$0x1]
        %v2223 = vperm.slane %v2221, 0
        %v2241 = vunpack.c.l.b16 %v2205
        %v2242 = vunpack.c.l.b16 %v2206
        %v2243 = vunpack.c.l.b16 %v2207
        %v2244 = vunpack.c.l.b16 %v2208
        %v2245 = vunpack.c.l.b16 %v2209
        %v2246 = vunpack.c.l.b16 %v2210
        %v2247 = vunpack.c.l.b16 %v2211
        %v2248 = vunpack.c.l.b16 %v2212
        %v2249 = vunpack.c.l.b16 %v2213
        %v2250 = vunpack.c.l.b16 %v2214
        %v2251 = vunpack.c.l.b16 %v2215
        %v2252 = vunpack.c.l.b16 %v2216
        %v2253 = vunpack.c.l.b16 %v2217
        %v2254 = vunpack.c.l.b16 %v2218
        %v2255 = vunpack.c.l.b16 %v2219
        %v2256 = vunpack.c.l.b16 %v2220
        %v2257 = vpack.c.b16 %v2242, %v2241
        %v2258 = vpack.c.b16 %v2244, %v2243
        %v2259 = vpack.c.b16 %v2246, %v2245
        %v2260 = vpack.c.b16 %v2248, %v2247
        %v2261 = vpack.c.b16 %v2250, %v2249
        %v2262 = vpack.c.b16 %v2252, %v2251
        %v2263 = vpack.c.b16 %v2254, %v2253
        %v2264 = vpack.c.b16 %v2256, %v2255
        %2273 = vmatpush.bf16.msra.mxu0 %v2264
        %2274 = vmatpush.bf16.msra.mxu0 %v2263
        %2275 = vmatpush.bf16.msra.mxu0 %v2262
        %2276 = vmatpush.bf16.msra.mxu0 %v2261
        %2277 = vmatpush.bf16.msra.mxu0 %v2260
        %2278 = vmatpush.bf16.msra.mxu0 %v2259
        %2279 = vmatpush.bf16.msra.mxu0 %v2258
        %2280 = vmatpush.bf16.msra.mxu0 %v2257
        %2281 = vmatmul.bf16.gmra.mxu0 %v2204
        %v2282 = vpop.f32.mrf.mxu0
        %v2283 = vadd.f32 %v2223, %v2282
        %v2284 = vpop.f32.mrf.mxu0
        %2285 = vdwg.mxu0
        %v2286 = vadd.f32 %v2089, %v2283
        %2287 = vst [vmem:[%s780] sm:$0xff] %v2286
        %p2288 = scmp.eq.s32.totalorder %s45, 1
        // Predicated region
        $region109: #{tpu_custom_call.1} parent=75 // pred_check
          %p2289 = pneg %p2288
        $region110: #{tpu_custom_call.1} parent=75 // pred_check_branch
          %2291 = sbr.rel (%p2289) target = $region112
        $region111: #{tpu_custom_call.1} parent=75 // pred_region
          %v2292 = vld [vmem:[%s12] sm:$0x1]
          %v2293 = vld [vmem:[%s13] sm:$0x1]
          %2294 = vadd.xlane.f32.xlu0 %v2286
          %v2295 = vpop.xlane.xlu0 %2294
          %v2296 = vmul.f32 %v2295, 0.03125
          %v2297 = vsub.f32 %v2286, %v2296
          %v2298 = vsel %vm812, %v2297, 0.0
          %v2299 = vmul.f32 %v2298, %v2298
          %2300 = vadd.xlane.f32.xlu0 %v2299
          %v2301 = vpop.xlane.xlu0 %2300
          %v2302 = vmul.f32 %v2301, 0.03125
          %v2303 = vadd.f32 %v2302, 1e-05
          %v2304 = vrsqrt.pop %v2303
          %v2305 = vmul.f32 %v2304, %v2303
          %v2306 = vmul.f32 %v2305, %v2304
          %v2307 = vmul.f32 0.5, %v2306
          %v2308 = vsub.f32 1.5, %v2307
          %v2309 = vmul.f32 %v2304, %v2308
          %vm2310 = vweird.f32 %v2303
          %vm2311 = vweird.f32 %v2304
          %vm2312 = vmor %vm2310, %vm2311
          %v2313 = vsel %vm2312, %v2304, %v2309
          %v2314 = vmul.f32 %v2298, %v2313
          %v2316 = vperm.slane %v2292, 0
          %v2318 = vmul.f32 %v2314, %v2316
          %v2320 = vperm.slane %v2293, 0
          %v2322 = vadd.f32 %v2318, %v2320
          %2323 = vst [vmem:[%s780] sm:$0xff] %v2322
        $region112: #{tpu_custom_call.1} parent=75 // pred_fallthru
          _
        %s2324 = sand.u32 %s414, 1
        %s2325 = scalar_lea.sflag [#allocation5], %s2324
        %s2326 = sand.u32 %s414, 1
        %s2327 = smul.addr %s2326, 8
        %s2328 = scalar_lea.vmem [#allocation15], %s2327
        // Predicated region
        $region113: #{tpu_custom_call.1} parent=75 // pred_check
          %p2329 = pneg %p424
        $region114: #{tpu_custom_call.1} parent=75 // pred_check_branch
          %2331 = sbr.rel (%p2329) target = $region116
        $region115: #{tpu_custom_call.1} parent=75 // pred_region
          %2333 = vsyncadd %s2325, 0
          %s2334 = smul.addr %s44, 8
          %s2335 = scalar_lea.hbm %s14, %s2334
          %s2337 = sshll.u32 %s2328, 4
          %s2338 = int_to_ptr.vmem [resolvable:$true] %s2337
          %s2339 = sshll.u32 %s2335, 4
          %s2340 = int_to_ptr.hbm [resolvable:$true] %s2339
          %2342 = dma.vmem_to_hbm [thread:$0]  %s2338, 128, %s2340, %s2325
        $region116: #{tpu_custom_call.1} parent=75 // pred_fallthru
          _
      $region76: #{tpu_custom_call.1} parent=5 // pred_fallthru
        _
      %p2343 = scmp.le.s32.totalorder 2, %s35
      // Predicated region
      $region117: #{tpu_custom_call.1} parent=5 // pred_check
        %p2344 = pneg %p2343
      $region118: #{tpu_custom_call.1} parent=5 // pred_check_branch
        %2346 = sbr.rel (%p2344) target = $region120
      $region119: #{tpu_custom_call.1} parent=5 // pred_region
        %s2347 = ssub.s32 %s35, 2
        // Predicated region
        $region121: #{tpu_custom_call.1} parent=119 // pred_check
          %p2348 = pneg %p430
        $region122: #{tpu_custom_call.1} parent=119 // pred_check_branch
          %2350 = sbr.rel (%p2348) target = $region124
        $region123: #{tpu_custom_call.1} parent=119 // pred_region
          %s2351 = sand.u32 %s415, 1
          %s2352 = scalar_lea.sflag [#allocation5], %s2351
          %s2353 = sand.u32 %s415, 1
          %s2354 = smul.addr %s2353, 8
          %s2355 = scalar_lea.vmem [#allocation15], %s2354
          %2357 = dma.done %s2352, 128
        $region124: #{tpu_custom_call.1} parent=119 // pred_fallthru
          _
      $region120: #{tpu_custom_call.1} parent=5 // pred_fallthru
        _
    $region6: #{tpu_custom_call.1} parent=1 // loop_footer
      %s39 = sadd.s32 1, %s35
    $region7: #{tpu_custom_call.1} parent=1 // loop_footer_branch
      %34 = sbr.rel target = $region3
    $region8: #{tpu_custom_call.1} parent=1 // loop_exit
      _
    %2358 = vsyncpa [#allocation4], 1
    %s2359 = scalar_lea.sflag [#allocation4], 1
    %2360 = vsyncpa %s2359, 1
    %2361 = vsyncpa [#allocation7], 1
    %s2362 = scalar_lea.sflag [#allocation7], 1
    %2363 = vsyncpa %s2362, 1
    %2364 = vsyncpa [#allocation10], 1
    %s2365 = scalar_lea.sflag [#allocation10], 1
    %2366 = vsyncpa %s2365, 1
    %2367 = vsyncpa [#allocation13], 1
    %s2368 = scalar_lea.sflag [#allocation13], 1
    %2369 = vsyncpa %s2368, 1
    %2370 = vsyncpa [#allocation5], 1
    %s2371 = scalar_lea.sflag [#allocation5], 1
    %2372 = vsyncpa %s2371, 1

</llo_original>
